<compile_context>
chip_gen: v7x
topology: tpu7x:2x2x1
jax: 0.10.0
libtpu: 0.0.40
codegen_flags: <defaults>
</compile_context>

<pallas_src>
import functools
import math

import jax
import jax.numpy as jnp
from jax.experimental import pallas as pl
from jax.experimental.pallas import tpu as pltpu


def _mha_kernel(x_ref, wqkv_ref, bqkv_ref, wout_ref, bout_ref, *rest,
                num_heads, head_dim, scale, has_mask):
    if has_mask:
        mask_ref, out_ref, attn_ref = rest
    else:
        out_ref, attn_ref = rest

    embed_dim = num_heads * head_dim

    x = x_ref[0].astype(jnp.float32)                  # (S, E)
    wqkv = wqkv_ref[...].astype(jnp.float32)          # (E, 3E)
    bqkv = bqkv_ref[...].astype(jnp.float32)          # (1, 3E)
    wout = wout_ref[...].astype(jnp.float32)          # (E, E)
    bout = bout_ref[...].astype(jnp.float32)          # (1, E)

    # Fused QKV projection (stays in VMEM / vregs).
    qkv = jnp.dot(x, wqkv, preferred_element_type=jnp.float32) + bqkv  # (S, 3E)

    if has_mask:
        maskf = mask_ref[0].astype(jnp.float32)       # (S, S), 1.0 = masked

    seq_len = x.shape[0]
    acc = jnp.zeros((seq_len, embed_dim), jnp.float32)

    # Static per-head loop: only static lane/sublane slices, no relayouts.
    for h in range(num_heads):
        q_h = qkv[:, h * head_dim:(h + 1) * head_dim]                          # (S, Dh)
        k_h = qkv[:, embed_dim + h * head_dim: embed_dim + (h + 1) * head_dim]  # (S, Dh)
        v_h = qkv[:, 2 * embed_dim + h * head_dim:
                  2 * embed_dim + (h + 1) * head_dim]                           # (S, Dh)

        # scores = q @ k^T / sqrt(Dh)  (contract the Dh axes; no transpose op)
        scores = jax.lax.dot_general(
            q_h, k_h, (((1,), (1,)), ((), ())),
            preferred_element_type=jnp.float32) * scale                         # (S, S)

        if has_mask:
            scores = jnp.where(maskf > 0.5, jnp.float32(-1e9), scores)

        # Numerically stable softmax in f32.
        m = jnp.max(scores, axis=-1, keepdims=True)
        p = jnp.exp(scores - m)
        attn = p / jnp.sum(p, axis=-1, keepdims=True)                           # (S, S)

        attn_ref[0, h, :, :] = attn.astype(attn_ref.dtype)

        ctx = jnp.dot(attn, v_h, preferred_element_type=jnp.float32)            # (S, Dh)
        # Fold the output projection in per-head: concat(ctx_h) @ W_out
        #   == sum_h ctx_h @ W_out[h*Dh:(h+1)*Dh, :]
        acc = acc + jnp.dot(ctx, wout[h * head_dim:(h + 1) * head_dim, :],
                            preferred_element_type=jnp.float32)

    out_ref[0] = (acc + bout).astype(out_ref.dtype)


def multi_head_attention(x, w_qkv, b_qkv, w_out, b_out, *, num_heads, mask=None):
    """Pallas implementation of MultiHeadAttentionWithWeights.forward.

    x:      (B, S, E)
    w_qkv:  (E, 3E)   (input-major layout, i.e. qkv = x @ w_qkv + b_qkv)
    b_qkv:  (3E,)
    w_out:  (E, E)    (output = concat_heads @ w_out + b_out)
    b_out:  (E,)
    mask:   optional (B, S, S) bool, True = masked (filled with -1e9)

    Returns (output (B,S,E), attn_weights (B,H,S,S)).
    """
    B, S, E = x.shape
    assert E % num_heads == 0, "embed_dim must be divisible by num_heads"
    head_dim = E // num_heads
    scale = 1.0 / math.sqrt(head_dim)

    kernel = functools.partial(
        _mha_kernel, num_heads=num_heads, head_dim=head_dim, scale=scale,
        has_mask=mask is not None)

    b_qkv2 = b_qkv.reshape(1, 3 * E)
    b_out2 = b_out.reshape(1, E)

    in_specs = [
        pl.BlockSpec((1, S, E), lambda b: (b, 0, 0)),      # x: one batch row per step
        pl.BlockSpec((E, 3 * E), lambda b: (0, 0)),        # weights: resident, same block
        pl.BlockSpec((1, 3 * E), lambda b: (0, 0)),
        pl.BlockSpec((E, E), lambda b: (0, 0)),
        pl.BlockSpec((1, E), lambda b: (0, 0)),
    ]
    args = [x, w_qkv, b_qkv2, w_out, b_out2]

    if mask is not None:
        maskf = mask.astype(jnp.float32)                   # stream only when present
        in_specs.append(pl.BlockSpec((1, S, S), lambda b: (b, 0, 0)))
        args.append(maskf)

    out_shape = (
        jax.ShapeDtypeStruct((B, S, E), x.dtype),
        jax.ShapeDtypeStruct((B, num_heads, S, S), jnp.float32),
    )
    out_specs = (
        pl.BlockSpec((1, S, E), lambda b: (b, 0, 0)),
        pl.BlockSpec((1, num_heads, S, S), lambda b: (b, 0, 0, 0)),
    )

    output, attn = pl.pallas_call(
        kernel,
        grid=(B,),
        in_specs=in_specs,
        out_specs=out_specs,
        out_shape=out_shape,
        compiler_params=pltpu.CompilerParams(
            dimension_semantics=("parallel",)),
    )(*args)
    return output, attn


def _reference(x, w_qkv, b_qkv, w_out, b_out, *, num_heads, mask=None):
    """Pure-JAX replica of the PyTorch module forward (same weight layout)."""
    B, S, E = x.shape
    Dh = E // num_heads
    qkv = jnp.dot(x, w_qkv) + b_qkv                          # (B, S, 3E)
    qkv = qkv.reshape(B, S, 3, num_heads, Dh)
    qkv = jnp.transpose(qkv, (2, 0, 3, 1, 4))                # (3, B, H, S, Dh)
    q, k, v = qkv[0], qkv[1], qkv[2]
    scores = jnp.einsum('bhsd,bhtd->bhst', q, k) / math.sqrt(Dh)
    if mask is not None:
        scores = jnp.where(mask[:, None, :, :], -1e9, scores)
    attn = jax.nn.softmax(scores, axis=-1)
    out = jnp.einsum('bhst,bhtd->bhsd', attn, v)
    out = jnp.transpose(out, (0, 2, 1, 3)).reshape(B, S, E)
    out = jnp.dot(out, w_out) + b_out
    return out, attn


def _xavier_uniform(key, fan_in, fan_out, dtype=jnp.float32):
    bound = math.sqrt(6.0 / (fan_in + fan_out))
    return jax.random.uniform(key, (fan_in, fan_out), dtype, -bound, bound)


if __name__ == "__main__":
    batch, seq_len, embed_dim, num_heads = 2, 8, 32, 4

    key = jax.random.PRNGKey(0)
    kx, kq, ko = jax.random.split(key, 3)

    x = jax.random.normal(kx, (batch, seq_len, embed_dim), dtype=jnp.float32)
    w_qkv = _xavier_uniform(kq, embed_dim, 3 * embed_dim)
    b_qkv = jnp.zeros((3 * embed_dim,), jnp.float32)
    w_out = _xavier_uniform(ko, embed_dim, embed_dim)
    b_out = jnp.zeros((embed_dim,), jnp.float32)

    # ---- no-mask path ----
    out, attn = multi_head_attention(
        x, w_qkv, b_qkv, w_out, b_out, num_heads=num_heads, mask=None)
    out, attn = jax.block_until_ready((out, attn))
    ref_out, ref_attn = _reference(
        x, w_qkv, b_qkv, w_out, b_out, num_heads=num_heads, mask=None)
    assert jnp.allclose(out, ref_out, rtol=1e-5, atol=1e-5), "output mismatch (no mask)"
    assert jnp.allclose(attn, ref_attn, rtol=1e-5, atol=1e-5), "attn mismatch (no mask)"

    # ---- masked path (causal mask: True above the diagonal = masked) ----
    causal = jnp.triu(jnp.ones((seq_len, seq_len), bool), k=1)
    mask = jnp.broadcast_to(causal, (batch, seq_len, seq_len))
    out_m, attn_m = multi_head_attention(
        x, w_qkv, b_qkv, w_out, b_out, num_heads=num_heads, mask=mask)
    out_m, attn_m = jax.block_until_ready((out_m, attn_m))
    ref_out_m, ref_attn_m = _reference(
        x, w_qkv, b_qkv, w_out, b_out, num_heads=num_heads, mask=mask)
    assert jnp.allclose(out_m, ref_out_m, rtol=1e-5, atol=1e-5), "output mismatch (mask)"
    assert jnp.allclose(attn_m, ref_attn_m, rtol=1e-5, atol=1e-5), "attn mismatch (mask)"

    print("KERNEL_OK")
</pallas_src>

<mosaic_0001>
module attributes {stable_mosaic.version = 11 : i64} {
  func.func @_mha_kernel(%arg0: i32, %arg1: memref<1x8x32xf32, #tpu.memory_space<vmem>>, %arg2: memref<32x96xf32, #tpu.memory_space<vmem>>, %arg3: memref<1x96xf32, #tpu.memory_space<vmem>>, %arg4: memref<32x32xf32, #tpu.memory_space<vmem>>, %arg5: memref<1x32xf32, #tpu.memory_space<vmem>>, %arg6: memref<1x8x32xf32, #tpu.memory_space<vmem>>, %arg7: memref<1x4x8x8xf32, #tpu.memory_space<vmem>>) attributes {dimension_semantics = [#tpu.dimension_semantics<parallel>], iteration_bounds = array<i64: 2>, scalar_prefetch = 0 : i64, scratch_operands = 0 : i64, tpu.core_type = #tpu.core_type<tc>, window_params = [{transform_indices = @transform_0, window_bounds = array<i64: 1, 8, 32>}, {pipeline_mode = #tpu.pipeline_mode<synchronous>, transform_indices = @transform_1, window_bounds = array<i64: 32, 96>}, {pipeline_mode = #tpu.pipeline_mode<synchronous>, transform_indices = @transform_2, window_bounds = array<i64: 1, 96>}, {pipeline_mode = #tpu.pipeline_mode<synchronous>, transform_indices = @transform_3, window_bounds = array<i64: 32, 32>}, {pipeline_mode = #tpu.pipeline_mode<synchronous>, transform_indices = @transform_4, window_bounds = array<i64: 1, 32>}, {transform_indices = @transform_5, window_bounds = array<i64: 1, 8, 32>}, {transform_indices = @transform_6, window_bounds = array<i64: 1, 4, 8, 8>}]} {
    %c0 = arith.constant 0 : index
    %c0_0 = arith.constant 0 : index
    %c0_1 = arith.constant 0 : index
    %0 = vector.load %arg1[%c0, %c0_0, %c0_1] : memref<1x8x32xf32, #tpu.memory_space<vmem>>, vector<1x8x32xf32>
    %1 = vector.shape_cast %0 : vector<1x8x32xf32> to vector<8x32xf32>
    %c0_2 = arith.constant 0 : index
    %c0_3 = arith.constant 0 : index
    %2 = vector.load %arg2[%c0_2, %c0_3] : memref<32x96xf32, #tpu.memory_space<vmem>>, vector<32x96xf32>
    %c0_4 = arith.constant 0 : index
    %c0_5 = arith.constant 0 : index
    %3 = vector.load %arg3[%c0_4, %c0_5] : memref<1x96xf32, #tpu.memory_space<vmem>>, vector<1x96xf32>
    %c0_6 = arith.constant 0 : index
    %c0_7 = arith.constant 0 : index
    %4 = vector.load %arg4[%c0_6, %c0_7] : memref<32x32xf32, #tpu.memory_space<vmem>>, vector<32x32xf32>
    %c0_8 = arith.constant 0 : index
    %c0_9 = arith.constant 0 : index
    %5 = vector.load %arg5[%c0_8, %c0_9] : memref<1x32xf32, #tpu.memory_space<vmem>>, vector<1x32xf32>
    %cst = arith.constant dense<0.000000e+00> : vector<8x96xf32>
    %6 = tpu.matmul %1, %2, %cst {dimension_numbers = #tpu.dot_dimension_numbers<[1], [0], [0], [1], [0, 0, 1, 1], [], []>} : vector<8x32xf32>, vector<32x96xf32>, vector<8x96xf32> -> vector<8x96xf32>
    %7 = vector.broadcast %3 : vector<1x96xf32> to vector<8x96xf32>
    %8 = arith.addf %6, %7 : vector<8x96xf32>
    %cst_10 = arith.constant 0.000000e+00 : f32
    %9 = vector.broadcast %cst_10 : f32 to vector<8x32xf32>
    %10 = vector.extract_strided_slice %8 {offsets = [0, 0], sizes = [8, 8], strides = [1, 1]} : vector<8x96xf32> to vector<8x8xf32>
    %11 = vector.extract_strided_slice %8 {offsets = [0, 32], sizes = [8, 8], strides = [1, 1]} : vector<8x96xf32> to vector<8x8xf32>
    %12 = vector.extract_strided_slice %8 {offsets = [0, 64], sizes = [8, 8], strides = [1, 1]} : vector<8x96xf32> to vector<8x8xf32>
    %cst_11 = arith.constant dense<0.000000e+00> : vector<8x8xf32>
    %13 = tpu.matmul %10, %11, %cst_11 {dimension_numbers = #tpu.dot_dimension_numbers<[1], [1], [0], [0], [0, 0, 1, 0], [], []>} : vector<8x8xf32>, vector<8x8xf32>, vector<8x8xf32> -> vector<8x8xf32>
    %cst_12 = arith.constant 0.353553385 : f32
    %14 = vector.broadcast %cst_12 : f32 to vector<8x8xf32>
    %15 = arith.mulf %13, %14 : vector<8x8xf32>
    %cst_13 = arith.constant dense<0xFF800000> : vector<8xf32>
    %16 = vector.multi_reduction <maximumf>, %15, %cst_13 [1] : vector<8x8xf32> to vector<8xf32>
    %17 = vector.shape_cast %16 : vector<8xf32> to vector<8x1xf32>
    %18 = vector.broadcast %17 : vector<8x1xf32> to vector<8x8xf32>
    %19 = arith.subf %15, %18 : vector<8x8xf32>
    %20 = math.exp %19 : vector<8x8xf32>
    %cst_14 = arith.constant dense<0.000000e+00> : vector<8xf32>
    %21 = vector.multi_reduction <add>, %20, %cst_14 [1] : vector<8x8xf32> to vector<8xf32>
    %22 = vector.shape_cast %21 : vector<8xf32> to vector<8x1xf32>
    %23 = vector.broadcast %22 : vector<8x1xf32> to vector<8x8xf32>
    %24 = arith.divf %20, %23 : vector<8x8xf32>
    %c0_15 = arith.constant 0 : index
    %c0_16 = arith.constant 0 : index
    %c0_17 = arith.constant 0 : index
    %c0_18 = arith.constant 0 : index
    %25 = vector.load %arg7[%c0_15, %c0_16, %c0_17, %c0_18] : memref<1x4x8x8xf32, #tpu.memory_space<vmem>>, vector<1x1x8x8xf32>
    %26 = vector.shape_cast %25 : vector<1x1x8x8xf32> to vector<8x8xf32>
    %27 = vector.shape_cast %24 : vector<8x8xf32> to vector<1x1x8x8xf32>
    tpu.vector_store %arg7[%c0_15, %c0_16, %c0_17, %c0_18], %27 {strides = array<i32>} : memref<1x4x8x8xf32, #tpu.memory_space<vmem>>, vector<1x1x8x8xf32>,
    %cst_19 = arith.constant dense<0.000000e+00> : vector<8x8xf32>
    %28 = tpu.matmul %24, %12, %cst_19 {dimension_numbers = #tpu.dot_dimension_numbers<[1], [0], [0], [1], [0, 0, 1, 1], [], []>} : vector<8x8xf32>, vector<8x8xf32>, vector<8x8xf32> -> vector<8x8xf32>
    %29 = vector.extract_strided_slice %4 {offsets = [0, 0], sizes = [8, 32], strides = [1, 1]} : vector<32x32xf32> to vector<8x32xf32>
    %cst_20 = arith.constant dense<0.000000e+00> : vector<8x32xf32>
    %30 = tpu.matmul %28, %29, %cst_20 {dimension_numbers = #tpu.dot_dimension_numbers<[1], [0], [0], [1], [0, 0, 1, 1], [], []>} : vector<8x8xf32>, vector<8x32xf32>, vector<8x32xf32> -> vector<8x32xf32>
    %31 = arith.addf %9, %30 : vector<8x32xf32>
    %32 = vector.extract_strided_slice %8 {offsets = [0, 8], sizes = [8, 8], strides = [1, 1]} : vector<8x96xf32> to vector<8x8xf32>
    %33 = vector.extract_strided_slice %8 {offsets = [0, 40], sizes = [8, 8], strides = [1, 1]} : vector<8x96xf32> to vector<8x8xf32>
    %34 = vector.extract_strided_slice %8 {offsets = [0, 72], sizes = [8, 8], strides = [1, 1]} : vector<8x96xf32> to vector<8x8xf32>
    %cst_21 = arith.constant dense<0.000000e+00> : vector<8x8xf32>
    %35 = tpu.matmul %32, %33, %cst_21 {dimension_numbers = #tpu.dot_dimension_numbers<[1], [1], [0], [0], [0, 0, 1, 0], [], []>} : vector<8x8xf32>, vector<8x8xf32>, vector<8x8xf32> -> vector<8x8xf32>
    %cst_22 = arith.constant 0.353553385 : f32
    %36 = vector.broadcast %cst_22 : f32 to vector<8x8xf32>
    %37 = arith.mulf %35, %36 : vector<8x8xf32>
    %cst_23 = arith.constant dense<0xFF800000> : vector<8xf32>
    %38 = vector.multi_reduction <maximumf>, %37, %cst_23 [1] : vector<8x8xf32> to vector<8xf32>
    %39 = vector.shape_cast %38 : vector<8xf32> to vector<8x1xf32>
    %40 = vector.broadcast %39 : vector<8x1xf32> to vector<8x8xf32>
    %41 = arith.subf %37, %40 : vector<8x8xf32>
    %42 = math.exp %41 : vector<8x8xf32>
    %cst_24 = arith.constant dense<0.000000e+00> : vector<8xf32>
    %43 = vector.multi_reduction <add>, %42, %cst_24 [1] : vector<8x8xf32> to vector<8xf32>
    %44 = vector.shape_cast %43 : vector<8xf32> to vector<8x1xf32>
    %45 = vector.broadcast %44 : vector<8x1xf32> to vector<8x8xf32>
    %46 = arith.divf %42, %45 : vector<8x8xf32>
    %c0_25 = arith.constant 0 : index
    %c1 = arith.constant 1 : index
    %c0_26 = arith.constant 0 : index
    %c0_27 = arith.constant 0 : index
    %47 = vector.load %arg7[%c0_25, %c1, %c0_26, %c0_27] : memref<1x4x8x8xf32, #tpu.memory_space<vmem>>, vector<1x1x8x8xf32>
    %48 = vector.shape_cast %47 : vector<1x1x8x8xf32> to vector<8x8xf32>
    %49 = vector.shape_cast %46 : vector<8x8xf32> to vector<1x1x8x8xf32>
    tpu.vector_store %arg7[%c0_25, %c1, %c0_26, %c0_27], %49 {strides = array<i32>} : memref<1x4x8x8xf32, #tpu.memory_space<vmem>>, vector<1x1x8x8xf32>,
    %cst_28 = arith.constant dense<0.000000e+00> : vector<8x8xf32>
    %50 = tpu.matmul %46, %34, %cst_28 {dimension_numbers = #tpu.dot_dimension_numbers<[1], [0], [0], [1], [0, 0, 1, 1], [], []>} : vector<8x8xf32>, vector<8x8xf32>, vector<8x8xf32> -> vector<8x8xf32>
    %51 = vector.extract_strided_slice %4 {offsets = [8, 0], sizes = [8, 32], strides = [1, 1]} : vector<32x32xf32> to vector<8x32xf32>
    %cst_29 = arith.constant dense<0.000000e+00> : vector<8x32xf32>
    %52 = tpu.matmul %50, %51, %cst_29 {dimension_numbers = #tpu.dot_dimension_numbers<[1], [0], [0], [1], [0, 0, 1, 1], [], []>} : vector<8x8xf32>, vector<8x32xf32>, vector<8x32xf32> -> vector<8x32xf32>
    %53 = arith.addf %31, %52 : vector<8x32xf32>
    %54 = vector.extract_strided_slice %8 {offsets = [0, 16], sizes = [8, 8], strides = [1, 1]} : vector<8x96xf32> to vector<8x8xf32>
    %55 = vector.extract_strided_slice %8 {offsets = [0, 48], sizes = [8, 8], strides = [1, 1]} : vector<8x96xf32> to vector<8x8xf32>
    %56 = vector.extract_strided_slice %8 {offsets = [0, 80], sizes = [8, 8], strides = [1, 1]} : vector<8x96xf32> to vector<8x8xf32>
    %cst_30 = arith.constant dense<0.000000e+00> : vector<8x8xf32>
    %57 = tpu.matmul %54, %55, %cst_30 {dimension_numbers = #tpu.dot_dimension_numbers<[1], [1], [0], [0], [0, 0, 1, 0], [], []>} : vector<8x8xf32>, vector<8x8xf32>, vector<8x8xf32> -> vector<8x8xf32>
    %cst_31 = arith.constant 0.353553385 : f32
    %58 = vector.broadcast %cst_31 : f32 to vector<8x8xf32>
    %59 = arith.mulf %57, %58 : vector<8x8xf32>
    %cst_32 = arith.constant dense<0xFF800000> : vector<8xf32>
    %60 = vector.multi_reduction <maximumf>, %59, %cst_32 [1] : vector<8x8xf32> to vector<8xf32>
    %61 = vector.shape_cast %60 : vector<8xf32> to vector<8x1xf32>
    %62 = vector.broadcast %61 : vector<8x1xf32> to vector<8x8xf32>
    %63 = arith.subf %59, %62 : vector<8x8xf32>
    %64 = math.exp %63 : vector<8x8xf32>
    %cst_33 = arith.constant dense<0.000000e+00> : vector<8xf32>
    %65 = vector.multi_reduction <add>, %64, %cst_33 [1] : vector<8x8xf32> to vector<8xf32>
    %66 = vector.shape_cast %65 : vector<8xf32> to vector<8x1xf32>
    %67 = vector.broadcast %66 : vector<8x1xf32> to vector<8x8xf32>
    %68 = arith.divf %64, %67 : vector<8x8xf32>
    %c0_34 = arith.constant 0 : index
    %c2 = arith.constant 2 : index
    %c0_35 = arith.constant 0 : index
    %c0_36 = arith.constant 0 : index
    %69 = vector.load %arg7[%c0_34, %c2, %c0_35, %c0_36] : memref<1x4x8x8xf32, #tpu.memory_space<vmem>>, vector<1x1x8x8xf32>
    %70 = vector.shape_cast %69 : vector<1x1x8x8xf32> to vector<8x8xf32>
    %71 = vector.shape_cast %68 : vector<8x8xf32> to vector<1x1x8x8xf32>
    tpu.vector_store %arg7[%c0_34, %c2, %c0_35, %c0_36], %71 {strides = array<i32>} : memref<1x4x8x8xf32, #tpu.memory_space<vmem>>, vector<1x1x8x8xf32>,
    %cst_37 = arith.constant dense<0.000000e+00> : vector<8x8xf32>
    %72 = tpu.matmul %68, %56, %cst_37 {dimension_numbers = #tpu.dot_dimension_numbers<[1], [0], [0], [1], [0, 0, 1, 1], [], []>} : vector<8x8xf32>, vector<8x8xf32>, vector<8x8xf32> -> vector<8x8xf32>
    %73 = vector.extract_strided_slice %4 {offsets = [16, 0], sizes = [8, 32], strides = [1, 1]} : vector<32x32xf32> to vector<8x32xf32>
    %cst_38 = arith.constant dense<0.000000e+00> : vector<8x32xf32>
    %74 = tpu.matmul %72, %73, %cst_38 {dimension_numbers = #tpu.dot_dimension_numbers<[1], [0], [0], [1], [0, 0, 1, 1], [], []>} : vector<8x8xf32>, vector<8x32xf32>, vector<8x32xf32> -> vector<8x32xf32>
    %75 = arith.addf %53, %74 : vector<8x32xf32>
    %76 = vector.extract_strided_slice %8 {offsets = [0, 24], sizes = [8, 8], strides = [1, 1]} : vector<8x96xf32> to vector<8x8xf32>
    %77 = vector.extract_strided_slice %8 {offsets = [0, 56], sizes = [8, 8], strides = [1, 1]} : vector<8x96xf32> to vector<8x8xf32>
    %78 = vector.extract_strided_slice %8 {offsets = [0, 88], sizes = [8, 8], strides = [1, 1]} : vector<8x96xf32> to vector<8x8xf32>
    %cst_39 = arith.constant dense<0.000000e+00> : vector<8x8xf32>
    %79 = tpu.matmul %76, %77, %cst_39 {dimension_numbers = #tpu.dot_dimension_numbers<[1], [1], [0], [0], [0, 0, 1, 0], [], []>} : vector<8x8xf32>, vector<8x8xf32>, vector<8x8xf32> -> vector<8x8xf32>
    %cst_40 = arith.constant 0.353553385 : f32
    %80 = vector.broadcast %cst_40 : f32 to vector<8x8xf32>
    %81 = arith.mulf %79, %80 : vector<8x8xf32>
    %cst_41 = arith.constant dense<0xFF800000> : vector<8xf32>
    %82 = vector.multi_reduction <maximumf>, %81, %cst_41 [1] : vector<8x8xf32> to vector<8xf32>
    %83 = vector.shape_cast %82 : vector<8xf32> to vector<8x1xf32>
    %84 = vector.broadcast %83 : vector<8x1xf32> to vector<8x8xf32>
    %85 = arith.subf %81, %84 : vector<8x8xf32>
    %86 = math.exp %85 : vector<8x8xf32>
    %cst_42 = arith.constant dense<0.000000e+00> : vector<8xf32>
    %87 = vector.multi_reduction <add>, %86, %cst_42 [1] : vector<8x8xf32> to vector<8xf32>
    %88 = vector.shape_cast %87 : vector<8xf32> to vector<8x1xf32>
    %89 = vector.broadcast %88 : vector<8x1xf32> to vector<8x8xf32>
    %90 = arith.divf %86, %89 : vector<8x8xf32>
    %c0_43 = arith.constant 0 : index
    %c3 = arith.constant 3 : index
    %c0_44 = arith.constant 0 : index
    %c0_45 = arith.constant 0 : index
    %91 = vector.load %arg7[%c0_43, %c3, %c0_44, %c0_45] : memref<1x4x8x8xf32, #tpu.memory_space<vmem>>, vector<1x1x8x8xf32>
    %92 = vector.shape_cast %91 : vector<1x1x8x8xf32> to vector<8x8xf32>
    %93 = vector.shape_cast %90 : vector<8x8xf32> to vector<1x1x8x8xf32>
    tpu.vector_store %arg7[%c0_43, %c3, %c0_44, %c0_45], %93 {strides = array<i32>} : memref<1x4x8x8xf32, #tpu.memory_space<vmem>>, vector<1x1x8x8xf32>,
    %cst_46 = arith.constant dense<0.000000e+00> : vector<8x8xf32>
    %94 = tpu.matmul %90, %78, %cst_46 {dimension_numbers = #tpu.dot_dimension_numbers<[1], [0], [0], [1], [0, 0, 1, 1], [], []>} : vector<8x8xf32>, vector<8x8xf32>, vector<8x8xf32> -> vector<8x8xf32>
    %95 = vector.extract_strided_slice %4 {offsets = [24, 0], sizes = [8, 32], strides = [1, 1]} : vector<32x32xf32> to vector<8x32xf32>
    %cst_47 = arith.constant dense<0.000000e+00> : vector<8x32xf32>
    %96 = tpu.matmul %94, %95, %cst_47 {dimension_numbers = #tpu.dot_dimension_numbers<[1], [0], [0], [1], [0, 0, 1, 1], [], []>} : vector<8x8xf32>, vector<8x32xf32>, vector<8x32xf32> -> vector<8x32xf32>
    %97 = arith.addf %75, %96 : vector<8x32xf32>
    %98 = vector.broadcast %5 : vector<1x32xf32> to vector<8x32xf32>
    %99 = arith.addf %97, %98 : vector<8x32xf32>
    %c0_48 = arith.constant 0 : index
    %c0_49 = arith.constant 0 : index
    %c0_50 = arith.constant 0 : index
    %100 = vector.load %arg6[%c0_48, %c0_49, %c0_50] : memref<1x8x32xf32, #tpu.memory_space<vmem>>, vector<1x8x32xf32>
    %101 = vector.shape_cast %100 : vector<1x8x32xf32> to vector<8x32xf32>
    %102 = vector.shape_cast %99 : vector<8x32xf32> to vector<1x8x32xf32>
    tpu.vector_store %arg6[%c0_48, %c0_49, %c0_50], %102 {strides = array<i32>} : memref<1x8x32xf32, #tpu.memory_space<vmem>>, vector<1x8x32xf32>,
    return
  }
  func.func @transform_0(%arg0: i32) -> (i32, i32, i32) {
    %c0_i32 = arith.constant 0 : i32
    %c0_i32_0 = arith.constant 0 : i32
    %c0_i32_1 = arith.constant 0 : i32
    return %arg0, %c0_i32, %c0_i32_0 : i32, i32, i32
  }
  func.func @transform_1(%arg0: i32) -> (i32, i32) {
    %c0_i32 = arith.constant 0 : i32
    %c0_i32_0 = arith.constant 0 : i32
    %c0_i32_1 = arith.constant 0 : i32
    return %c0_i32, %c0_i32_0 : i32, i32
  }
  func.func @transform_2(%arg0: i32) -> (i32, i32) {
    %c0_i32 = arith.constant 0 : i32
    %c0_i32_0 = arith.constant 0 : i32
    %c0_i32_1 = arith.constant 0 : i32
    return %c0_i32, %c0_i32_0 : i32, i32
  }
  func.func @transform_3(%arg0: i32) -> (i32, i32) {
    %c0_i32 = arith.constant 0 : i32
    %c0_i32_0 = arith.constant 0 : i32
    %c0_i32_1 = arith.constant 0 : i32
    return %c0_i32, %c0_i32_0 : i32, i32
  }
  func.func @transform_4(%arg0: i32) -> (i32, i32) {
    %c0_i32 = arith.constant 0 : i32
    %c0_i32_0 = arith.constant 0 : i32
    %c0_i32_1 = arith.constant 0 : i32
    return %c0_i32, %c0_i32_0 : i32, i32
  }
  func.func @transform_5(%arg0: i32) -> (i32, i32, i32) {
    %c0_i32 = arith.constant 0 : i32
    %c0_i32_0 = arith.constant 0 : i32
    %c0_i32_1 = arith.constant 0 : i32
    return %arg0, %c0_i32, %c0_i32_0 : i32, i32, i32
  }
  func.func @transform_6(%arg0: i32) -> (i32, i32, i32, i32) {
    %c0_i32 = arith.constant 0 : i32
    %c0_i32_0 = arith.constant 0 : i32
    %c0_i32_1 = arith.constant 0 : i32
    %c0_i32_2 = arith.constant 0 : i32
    return %arg0, %c0_i32, %c0_i32_0, %c0_i32_1 : i32, i32, i32, i32
  }
}

</mosaic_0001>

<llo_original>
// kernel: tpu_custom_call.1
$region0: #{tpu_custom_call.1}
  #allocation0 [shape = 'u32[]', space=smem, size = 0x4, offset = 0x4, fixed_abs, tag = 'smem constant byte address 0x4 - core index']
  #allocation1 [shape = 'u32[144,128]{1,0:T(1,128)}', space=vmem, size = 0x12000, scoped, tag = 'internal scratch']
  %s0 = inlined_call_operand.hbm [shape: f32[2,8,32], index: 0, kind: input, shape index: {}]
  %s1 = inlined_call_operand.hbm [shape: f32[32,96], index: 1, kind: input, shape index: {}]
  %s2 = inlined_call_operand.vmem [shape: f32[1,96], index: 2, kind: input, shape index: {}]
  %s3 = inlined_call_operand.hbm [shape: f32[32,32], index: 3, kind: input, shape index: {}]
  %s4 = inlined_call_operand.vmem [shape: f32[1,32], index: 4, kind: input, shape index: {}]
  %s5 = inlined_call_operand.hbm [shape: f32[2,8,32], index: 5, kind: output, shape index: {0}]
  %s6 = inlined_call_operand.hbm [shape: f32[2,4,8,8], index: 6, kind: output, shape index: {1}]
  %7 = xla_tuple %s5, %s6
  %s8 = sld [smem:[#allocation0]]
  $region73: #{tpu_custom_call.1} parent=0
    _
  %s10 = ssub.s32 1, %s8
  %s11 = scalar_select 0, %s10, %s8
  $region1: #{tpu_custom_call.1} parent=0
    #allocation2 [shape = 'u8[8192]{0}', space=vmem, size = 0x2000, scoped, tag = 'input window, operand 0']
    #allocation3 [shape = 's32[2]{0}', space=sflag, size = 0x8, scoped, tag = 'scoped memory for tpu_custom_call.1']
    #allocation4 [shape = 's32[2]{0}', space=sflag, size = 0x8, scoped, tag = 'scoped memory for tpu_custom_call.1']
    #allocation5 [shape = 'u8[16384]{0}', space=vmem, size = 0x4000, scoped, tag = 'input window, operand 1, single buffered']
    #allocation6 [shape = 's32[1]{0}', space=sflag, size = 0x4, scoped, tag = 'scoped memory for tpu_custom_call.1']
    #allocation7 [shape = 'u8[16384]{0}', space=vmem, size = 0x4000, scoped, tag = 'input window, operand 3, single buffered']
    #allocation8 [shape = 'u8[8192]{0}', space=vmem, size = 0x2000, scoped, tag = 'output window, operand 0']
    #allocation9 [shape = 'u8[32768]{0}', space=vmem, size = 0x8000, scoped, tag = 'output window, operand 1']
    #allocation10 [shape = 's32[2]{0}', space=sflag, size = 0x8, scoped, tag = 'scoped memory for tpu_custom_call.1']
    %12 = vsyncpa [#allocation3], 0
    %s13 = scalar_lea.sflag [#allocation3], 1
    %14 = vsyncpa %s13, 0
    %15 = vsyncpa [#allocation6], 0
    %16 = vsyncpa [#allocation4], 0
    %s17 = scalar_lea.sflag [#allocation4], 1
    %18 = vsyncpa %s17, 0
    %19 = vsyncpa [#allocation10], 0
    %s20 = scalar_lea.sflag [#allocation10], 1
    %21 = vsyncpa %s20, 0
    loop: start=0, step=1, limit=4
    $region2: #{tpu_custom_call.1} parent=1 // loop_pre_header
      _
    $region3: #{tpu_custom_call.1} parent=1 // loop_header
      %s23 = sphi 0, %s27
      %p24 = scmp.ge.s32.totalorder %s23, 4
      %s33 = sphi 0, %s35
      %s36 = sphi 0, %s33
      %s37 = sphi 0, %s36
      %s53 = sphi 0, %s37
      %s57 = sphi 0, %s57
      %s59 = sphi 0, %s57
      %s60 = sphi 0, %s59
      %s74 = sphi 0, %s60
      %s78 = sphi 0, %s78
      %s80 = sphi 0, %s78
      %s81 = sphi 0, %s80
      %s95 = sphi 0, %s81
      %s99 = sphi 0, %s99
      %s101 = sphi 0, %s99
      %s102 = sphi 0, %s101
      %s116 = sphi 0, %s102
      %s120 = sphi 0, %s120
      %s122 = sphi 0, %s120
      %s123 = sphi 0, %s122
      %s137 = sphi 0, %s123
      %s143 = sphi 0, %s145
      %s146 = sphi 0, %s143
      %s147 = sphi 0, %s146
      %s163 = sphi 0, %s147
      %s169 = sphi 0, %s171
      %s172 = sphi 0, %s169
      %s173 = sphi 0, %s172
      %s189 = sphi 0, %s173
    $region4: #{tpu_custom_call.1} parent=1 // loop_header_branch
      %26 = sbr.rel (%p24) target = $region8
    $region5: #{tpu_custom_call.1} parent=1 // loop_body
      %s28 = ssub.s32 %s23, 1
      %s29 = ssub.s32 %s23, 2
      %s30 = sadd.s32 %s23, 1
      %s31 = ssub.s32 %s23, %s30
      %p32 = scmp.eq.s32.totalorder %s31, 0
      %s34 = sadd.s32 %s33, 1
      %s35 = scalar_select %p32, %s33, %s34
      %p38 = pneg %p32
      %p39 = scmp.eq.s32.totalorder %s23, 1
      %p40 = por %p38, %p39
      %p41 = scmp.ne.s32.totalorder %s33, %s36
      %p42 = scmp.eq.s32.totalorder %s23, 0
      %p43 = por %p41, %p42
      %p44 = scmp.ne.s32.totalorder %s33, %s36
      %p45 = scmp.eq.s32.totalorder %s28, 1
      %p46 = por %p44, %p45
      %p47 = scmp.ne.s32.totalorder %s36, %s37
      %p48 = scmp.eq.s32.totalorder %s28, 0
      %p49 = por %p47, %p48
      %p50 = scmp.ne.s32.totalorder %s36, %s37
      %p51 = scmp.eq.s32.totalorder %s29, 1
      %p52 = por %p50, %p51
      %p54 = scmp.ne.s32.totalorder %s37, %s53
      %p55 = scmp.eq.s32.totalorder %s29, 0
      %p56 = por %p54, %p55
      %s58 = sadd.s32 %s57, 1
      %p61 = scmp.eq.s32.totalorder %s23, 1
      %p62 = scmp.ne.s32.totalorder %s57, %s59
      %p63 = scmp.eq.s32.totalorder %s23, 0
      %p64 = por %p62, %p63
      %p65 = scmp.ne.s32.totalorder %s57, %s59
      %p66 = scmp.eq.s32.totalorder %s28, 1
      %p67 = por %p65, %p66
      %p68 = scmp.ne.s32.totalorder %s59, %s60
      %p69 = scmp.eq.s32.totalorder %s28, 0
      %p70 = por %p68, %p69
      %p71 = scmp.ne.s32.totalorder %s59, %s60
      %p72 = scmp.eq.s32.totalorder %s29, 1
      %p73 = por %p71, %p72
      %p75 = scmp.ne.s32.totalorder %s60, %s74
      %p76 = scmp.eq.s32.totalorder %s29, 0
      %p77 = por %p75, %p76
      %s79 = sadd.s32 %s78, 1
      %p82 = scmp.eq.s32.totalorder %s23, 1
      %p83 = scmp.ne.s32.totalorder %s78, %s80
      %p84 = scmp.eq.s32.totalorder %s23, 0
      %p85 = por %p83, %p84
      %p86 = scmp.ne.s32.totalorder %s78, %s80
      %p87 = scmp.eq.s32.totalorder %s28, 1
      %p88 = por %p86, %p87
      %p89 = scmp.ne.s32.totalorder %s80, %s81
      %p90 = scmp.eq.s32.totalorder %s28, 0
      %p91 = por %p89, %p90
      %p92 = scmp.ne.s32.totalorder %s80, %s81
      %p93 = scmp.eq.s32.totalorder %s29, 1
      %p94 = por %p92, %p93
      %p96 = scmp.ne.s32.totalorder %s81, %s95
      %p97 = scmp.eq.s32.totalorder %s29, 0
      %p98 = por %p96, %p97
      %s100 = sadd.s32 %s99, 1
      %p103 = scmp.eq.s32.totalorder %s23, 1
      %p104 = scmp.ne.s32.totalorder %s99, %s101
      %p105 = scmp.eq.s32.totalorder %s23, 0
      %p106 = por %p104, %p105
      %p107 = scmp.ne.s32.totalorder %s99, %s101
      %p108 = scmp.eq.s32.totalorder %s28, 1
      %p109 = por %p107, %p108
      %p110 = scmp.ne.s32.totalorder %s101, %s102
      %p111 = scmp.eq.s32.totalorder %s28, 0
      %p112 = por %p110, %p111
      %p113 = scmp.ne.s32.totalorder %s101, %s102
      %p114 = scmp.eq.s32.totalorder %s29, 1
      %p115 = por %p113, %p114
      %p117 = scmp.ne.s32.totalorder %s102, %s116
      %p118 = scmp.eq.s32.totalorder %s29, 0
      %p119 = por %p117, %p118
      %s121 = sadd.s32 %s120, 1
      %p124 = scmp.eq.s32.totalorder %s23, 1
      %p125 = scmp.ne.s32.totalorder %s120, %s122
      %p126 = scmp.eq.s32.totalorder %s23, 0
      %p127 = por %p125, %p126
      %p128 = scmp.ne.s32.totalorder %s120, %s122
      %p129 = scmp.eq.s32.totalorder %s28, 1
      %p130 = por %p128, %p129
      %p131 = scmp.ne.s32.totalorder %s122, %s123
      %p132 = scmp.eq.s32.totalorder %s28, 0
      %p133 = por %p131, %p132
      %p134 = scmp.ne.s32.totalorder %s122, %s123
      %p135 = scmp.eq.s32.totalorder %s29, 1
      %p136 = por %p134, %p135
      %p138 = scmp.ne.s32.totalorder %s123, %s137
      %p139 = scmp.eq.s32.totalorder %s29, 0
      %p140 = por %p138, %p139
      %s141 = ssub.s32 %s23, %s30
      %p142 = scmp.eq.s32.totalorder %s141, 0
      %s144 = sadd.s32 %s143, 1
      %s145 = scalar_select %p142, %s143, %s144
      %p148 = pneg %p142
      %p149 = scmp.eq.s32.totalorder %s23, 1
      %p150 = por %p148, %p149
      %p151 = scmp.ne.s32.totalorder %s143, %s146
      %p152 = scmp.eq.s32.totalorder %s23, 0
      %p153 = por %p151, %p152
      %p154 = scmp.ne.s32.totalorder %s143, %s146
      %p155 = scmp.eq.s32.totalorder %s28, 1
      %p156 = por %p154, %p155
      %p157 = scmp.ne.s32.totalorder %s146, %s147
      %p158 = scmp.eq.s32.totalorder %s28, 0
      %p159 = por %p157, %p158
      %p160 = scmp.ne.s32.totalorder %s146, %s147
      %p161 = scmp.eq.s32.totalorder %s29, 1
      %p162 = por %p160, %p161
      %p164 = scmp.ne.s32.totalorder %s147, %s163
      %p165 = scmp.eq.s32.totalorder %s29, 0
      %p166 = por %p164, %p165
      %s167 = ssub.s32 %s23, %s30
      %p168 = scmp.eq.s32.totalorder %s167, 0
      %s170 = sadd.s32 %s169, 1
      %s171 = scalar_select %p168, %s169, %s170
      %p174 = pneg %p168
      %p175 = scmp.eq.s32.totalorder %s23, 1
      %p176 = por %p174, %p175
      %p177 = scmp.ne.s32.totalorder %s169, %s172
      %p178 = scmp.eq.s32.totalorder %s23, 0
      %p179 = por %p177, %p178
      %p180 = scmp.ne.s32.totalorder %s169, %s172
      %p181 = scmp.eq.s32.totalorder %s28, 1
      %p182 = por %p180, %p181
      %p183 = scmp.ne.s32.totalorder %s172, %s173
      %p184 = scmp.eq.s32.totalorder %s28, 0
      %p185 = por %p183, %p184
      %p186 = scmp.ne.s32.totalorder %s172, %s173
      %p187 = scmp.eq.s32.totalorder %s29, 1
      %p188 = por %p186, %p187
      %p190 = scmp.ne.s32.totalorder %s173, %s189
      %p191 = scmp.eq.s32.totalorder %s29, 0
      %p192 = por %p190, %p191
      %p193 = scmp.le.s32.totalorder 1, %s23
      %p194 = scmp.lt.s32.totalorder %s23, 3
      %p195 = pnand %p193, %p194
      %p196 = pneg %p195
      // Predicated region
      $region9: #{tpu_custom_call.1} parent=5 // pred_check
        _
      $region10: #{tpu_custom_call.1} parent=5 // pred_check_branch
        %198 = sbr.rel (%p195) target = $region12
      $region11: #{tpu_custom_call.1} parent=5 // pred_region
        %s199 = ssub.s32 %s23, 1
        // Predicated region
        $region13: #{tpu_custom_call.1} parent=11 // pred_check
          %p200 = pneg %p70
        $region14: #{tpu_custom_call.1} parent=11 // pred_check_branch
          %202 = sbr.rel (%p200) target = $region16
        $region15: #{tpu_custom_call.1} parent=11 // pred_region
          %s204 = ssub.s32 512, 512
          %205 = vsyncadd [#allocation6], %s204
          %s206 = sshll.u32 [#allocation5], 4
          %s207 = int_to_ptr.vmem [resolvable:$true] %s206
          %212 = dma.hbm_to_vmem [thread:$0]  %s1, 512, %s207, [#allocation6], 128, 128, 8
        $region16: #{tpu_custom_call.1} parent=11 // pred_fallthru
          _
        // Predicated region
        $region17: #{tpu_custom_call.1} parent=11 // pred_check
          %p213 = pneg %p91
        $region18: #{tpu_custom_call.1} parent=11 // pred_check_branch
          %215 = sbr.rel (%p213) target = $region20
        $region19: #{tpu_custom_call.1} parent=11 // pred_region
          _
        $region20: #{tpu_custom_call.1} parent=11 // pred_fallthru
          _
        // Predicated region
        $region21: #{tpu_custom_call.1} parent=11 // pred_check
          %p216 = pneg %p112
        $region22: #{tpu_custom_call.1} parent=11 // pred_check_branch
          %218 = sbr.rel (%p216) target = $region24
        $region23: #{tpu_custom_call.1} parent=11 // pred_region
          %s220 = ssub.s32 512, 512
          %221 = vsyncadd [#allocation6], %s220
          %s222 = sshll.u32 [#allocation7], 4
          %s223 = int_to_ptr.vmem [resolvable:$true] %s222
          %228 = dma.hbm_to_vmem [thread:$0]  %s3, 512, %s223, [#allocation6], 128, 128, 8
        $region24: #{tpu_custom_call.1} parent=11 // pred_fallthru
          _
        // Predicated region
        $region25: #{tpu_custom_call.1} parent=11 // pred_check
          %p229 = pneg %p133
        $region26: #{tpu_custom_call.1} parent=11 // pred_check_branch
          %231 = sbr.rel (%p229) target = $region28
        $region27: #{tpu_custom_call.1} parent=11 // pred_region
          _
        $region28: #{tpu_custom_call.1} parent=11 // pred_fallthru
          _
      $region12: #{tpu_custom_call.1} parent=5 // pred_fallthru
        _
      %p232 = scmp.lt.s32.totalorder %s23, 2
      // Predicated region
      $region29: #{tpu_custom_call.1} parent=5 // pred_check
        %p233 = pneg %p232
      $region30: #{tpu_custom_call.1} parent=5 // pred_check_branch
        %235 = sbr.rel (%p233) target = $region32
      $region31: #{tpu_custom_call.1} parent=5 // pred_region
        // Predicated region
        $region33: #{tpu_custom_call.1} parent=31 // pred_check
          %p236 = pneg %p43
        $region34: #{tpu_custom_call.1} parent=31 // pred_check_branch
          %238 = sbr.rel (%p236) target = $region36
        $region35: #{tpu_custom_call.1} parent=31 // pred_region
          %s239 = sand.u32 %s33, 1
          %s240 = scalar_lea.sflag [#allocation3], %s239
          %s241 = sand.u32 %s33, 1
          %s242 = smul.addr %s241, 8
          %s243 = scalar_lea.vmem [#allocation2], %s242
          %s245 = ssub.s32 128, 128
          %246 = vsyncadd %s240, %s245
          %s247 = smul.addr %s23, 128
          %s248 = scalar_lea.hbm %s0, %s247
          %s250 = sshll.u32 %s243, 4
          %s251 = int_to_ptr.vmem [resolvable:$true] %s250
          %253 = dma.hbm_to_vmem [thread:$0]  %s248, 128, %s251, %s240
        $region36: #{tpu_custom_call.1} parent=31 // pred_fallthru
          _
      $region32: #{tpu_custom_call.1} parent=5 // pred_fallthru
        _
      %p254 = scmp.le.s32.totalorder 1, %s23
      %p255 = scmp.lt.s32.totalorder %s23, 3
      %p256 = pnand %p254, %p255
      %p257 = pneg %p256
      // Predicated region
      $region37: #{tpu_custom_call.1} parent=5 // pred_check
        _
      $region38: #{tpu_custom_call.1} parent=5 // pred_check_branch
        %259 = sbr.rel (%p256) target = $region40
      $region39: #{tpu_custom_call.1} parent=5 // pred_region
        %s260 = ssub.s32 %s23, 1
        %s261 = sand.u32 %s36, 1
        %s262 = scalar_lea.sflag [#allocation3], %s261
        %s263 = sand.u32 %s36, 1
        %s264 = smul.addr %s263, 8
        %s265 = scalar_lea.vmem [#allocation2], %s264
        // Predicated region
        $region41: #{tpu_custom_call.1} parent=39 // pred_check
          %p266 = pneg %p49
        $region42: #{tpu_custom_call.1} parent=39 // pred_check_branch
          %268 = sbr.rel (%p266) target = $region44
        $region43: #{tpu_custom_call.1} parent=39 // pred_region
          %269 = dma.done %s262, 128
        $region44: #{tpu_custom_call.1} parent=39 // pred_fallthru
          _
        // Predicated region
        $region45: #{tpu_custom_call.1} parent=39 // pred_check
          %p270 = pneg %p70
        $region46: #{tpu_custom_call.1} parent=39 // pred_check_branch
          %272 = sbr.rel (%p270) target = $region48
        $region47: #{tpu_custom_call.1} parent=39 // pred_region
          %273 = dma.done [#allocation6], 512
        $region48: #{tpu_custom_call.1} parent=39 // pred_fallthru
          _
        // Predicated region
        $region49: #{tpu_custom_call.1} parent=39 // pred_check
          %p274 = pneg %p112
        $region50: #{tpu_custom_call.1} parent=39 // pred_check_branch
          %276 = sbr.rel (%p274) target = $region52
        $region51: #{tpu_custom_call.1} parent=39 // pred_region
          %277 = dma.done [#allocation6], 512
        $region52: #{tpu_custom_call.1} parent=39 // pred_fallthru
          _
        %s278 = sand.u32 %s36, 1
        %s279 = scalar_lea.sflag [#allocation3], %s278
        %s280 = sand.u32 %s36, 1
        %s281 = smul.addr %s280, 8
        %s282 = scalar_lea.vmem [#allocation2], %s281
        %p283 = pneg %p49
        %p284 = pneg %p46
        %p285 = pneg %p70
        %p286 = pneg %p67
        %p287 = pneg %p91
        %p288 = pneg %p88
        %p289 = pneg %p112
        %p290 = pneg %p109
        %p291 = pneg %p133
        %p292 = pneg %p130
        %p293 = pneg %p159
        %p294 = pneg %p156
        %s295 = sand.u32 %s146, 1
        %s296 = scalar_lea.sflag [#allocation4], %s295
        %s297 = sand.u32 %s146, 1
        %s298 = smul.addr %s297, 8
        %s299 = scalar_lea.vmem [#allocation8], %s298
        %p300 = pneg %p185
        %p301 = pneg %p182
        %s302 = sand.u32 %s172, 1
        %s303 = scalar_lea.sflag [#allocation10], %s302
        %s304 = sand.u32 %s172, 1
        %s305 = smul.addr %s304, 32
        %s306 = scalar_lea.vmem [#allocation9], %s305
        %v307 = vld [vmem:[%s265] sm:$0xff]
        %v308 = vld [vmem:[#allocation5] sm:$0xff]
        %v309 = vld [vmem:[#allocation5 + $0x8] sm:$0xff]
        %v310 = vld [vmem:[#allocation5 + $0x10] sm:$0xff]
        %v311 = vld [vmem:[#allocation5 + $0x18] sm:$0xff]
        %v312 = vld [vmem:[%s2] sm:$0x1]
        %v313 = vld [vmem:[#allocation7] sm:$0xff]
        %v314 = vld [vmem:[#allocation7 + $0x8] sm:$0xff]
        %v315 = vld [vmem:[#allocation7 + $0x10] sm:$0xff]
        %v316 = vld [vmem:[#allocation7 + $0x18] sm:$0xff]
        %v317 = vld [vmem:[%s4] sm:$0x1]
        %v319 = vlaneseq
        %v320 = vshrl.u32 %v319, 7
        %v321 = vsub.s32 0, %v320
        %v322 = vrot.slane %v312, %v321
        %vm324 = vcmask 261120
        %v326 = vsel %vm324, %v307, 0
        %328 = vmatprep.subr.mxu0 0.0
        %329 = vmatpush1.msra.mxu0 %v308
        %330 = vmatprep.subr.mxu0 0.0
        %331 = vmatpush1.msra.mxu0 %v309
        %332 = vmatprep.subr.mxu0 0.0
        %333 = vmatpush1.msra.mxu0 %v310
        %334 = vmatprep.subr.mxu0 0.0
        %335 = vmatpush1.msra.mxu0 %v311
        %336 = vmatprep.subr.mxu0 0.0
        %337 = vmatpush1.msra.mxu0 0.0
        %338 = vmatprep.subr.mxu0 0.0
        %339 = vmatpush1.msra.mxu0 0.0
        %340 = vmatprep.subr.mxu0 0.0
        %341 = vmatpush1.msra.mxu0 0.0
        %342 = vmatprep.subr.mxu0 0.0
        %343 = vmatpush1.msra.mxu0 0.0
        %344 = vmatprep.subr.mxu0 0.0
        %345 = vmatpush1.msra.mxu0 0.0
        %346 = vmatprep.subr.mxu0 0.0
        %347 = vmatpush1.msra.mxu0 0.0
        %348 = vmatprep.subr.mxu0 0.0
        %349 = vmatpush1.msra.mxu0 0.0
        %350 = vmatprep.subr.mxu0 0.0
        %351 = vmatpush1.msra.mxu0 0.0
        %352 = vmatprep.subr.mxu0 0.0
        %353 = vmatpush1.msra.mxu0 0.0
        %354 = vmatprep.subr.mxu0 0.0
        %355 = vmatpush1.msra.mxu0 0.0
        %356 = vmatprep.subr.mxu0 0.0
        %357 = vmatpush1.msra.mxu0 0.0
        %358 = vmatprep.subr.mxu0 0.0
        %359 = vmatpush1.msra.mxu0 0.0
        %360 = vmatprep.subr.mxu0 0.0
        %361 = vmatpush1.msra.mxu0 0.0
        %362 = vmatprep.subr.mxu0 0.0
        %363 = vmatpush1.msra.mxu0 0.0
        %364 = vmatprep.subr.mxu0 0.0
        %365 = vmatpush1.msra.mxu0 0.0
        %366 = vmatprep.subr.mxu0 0.0
        %367 = vmatpush1.msra.mxu0 0.0
        %368 = vmatprep.subr.mxu0 0.0
        %369 = vmatpush1.msra.mxu0 0.0
        %370 = vmatprep.subr.mxu0 0.0
        %371 = vmatpush1.msra.mxu0 0.0
        %372 = vmatprep.subr.mxu0 0.0
        %373 = vmatpush1.msra.mxu0 0.0
        %374 = vmatprep.subr.mxu0 0.0
        %375 = vmatpush1.msra.mxu0 0.0
        %376 = vmatprep.subr.mxu0 0.0
        %377 = vmatpush1.msra.mxu0 0.0
        %378 = vmatprep.subr.mxu0 0.0
        %379 = vmatpush1.msra.mxu0 0.0
        %380 = vmatprep.subr.mxu0 0.0
        %381 = vmatpush1.msra.mxu0 0.0
        %382 = vmatprep.subr.mxu0 0.0
        %383 = vmatpush1.msra.mxu0 0.0
        %384 = vmatprep.subr.mxu0 0.0
        %385 = vmatpush1.msra.mxu0 0.0
        %386 = vmatprep.subr.mxu0 0.0
        %387 = vmatpush1.msra.mxu0 0.0
        %388 = vmatprep.subr.mxu0 0.0
        %389 = vmatpush1.msra.mxu0 0.0
        %390 = vmatprep.subr.mxu0 0.0
        %391 = vmatpush1.msra.mxu0 0.0
        %392 = vmatprep.mubr.f32.mxu0 0.0
        %393 = vmatmul.mubr.f32.gmra.mrb[0].mxu0 %v326
        %v394 = vpop.f32.mrb[0].mxu0
        %v395 = vadd.f32 %v322, %v394
        %v396 = vpop.f32.mrb[0].mxu0
        %397 = vdwg.mxu0
        %399 = vrot.lane.b32.xlu0 %v395, 96
        %v400 = vpop.permute.xlu0 %399
        %vm401 = vcmask 64512
        %v402 = vsel %vm401, %v395, 0
        %v404 = vsel %vm401, %v400, 0
        %406 = vmatprep.subr.mxu0 0.0
        %407 = vmatpush1.xpose.msra.mxu0 %v404
        %408 = vmatprep.subr.mxu0 0.0
        %409 = vmatpush1.xpose.msra.mxu0 0.0
        %410 = vmatprep.subr.mxu0 0.0
        %411 = vmatpush1.xpose.msra.mxu0 0.0
        %412 = vmatprep.subr.mxu0 0.0
        %413 = vmatpush1.xpose.msra.mxu0 0.0
        %414 = vmatprep.subr.mxu0 0.0
        %415 = vmatpush1.xpose.msra.mxu0 0.0
        %416 = vmatprep.subr.mxu0 0.0
        %417 = vmatpush1.xpose.msra.mxu0 0.0
        %418 = vmatprep.subr.mxu0 0.0
        %419 = vmatpush1.xpose.msra.mxu0 0.0
        %420 = vmatprep.subr.mxu0 0.0
        %421 = vmatpush1.xpose.msra.mxu0 0.0
        %422 = vmatprep.subr.mxu0 0.0
        %423 = vmatpush1.xpose.msra.mxu0 0.0
        %424 = vmatprep.subr.mxu0 0.0
        %425 = vmatpush1.xpose.msra.mxu0 0.0
        %426 = vmatprep.subr.mxu0 0.0
        %427 = vmatpush1.xpose.msra.mxu0 0.0
        %428 = vmatprep.subr.mxu0 0.0
        %429 = vmatpush1.xpose.msra.mxu0 0.0
        %430 = vmatprep.subr.mxu0 0.0
        %431 = vmatpush1.xpose.msra.mxu0 0.0
        %432 = vmatprep.subr.mxu0 0.0
        %433 = vmatpush1.xpose.msra.mxu0 0.0
        %434 = vmatprep.subr.mxu0 0.0
        %435 = vmatpush1.xpose.msra.mxu0 0.0
        %436 = vmatprep.subr.mxu0 0.0
        %437 = vmatpush1.xpose.msra.mxu0 0.0
        %438 = vmatprep.subr.mxu0 0.0
        %439 = vmatpush1.xpose.msra.mxu0 0.0
        %440 = vmatprep.subr.mxu0 0.0
        %441 = vmatpush1.xpose.msra.mxu0 0.0
        %442 = vmatprep.subr.mxu0 0.0
        %443 = vmatpush1.xpose.msra.mxu0 0.0
        %444 = vmatprep.subr.mxu0 0.0
        %445 = vmatpush1.xpose.msra.mxu0 0.0
        %446 = vmatprep.subr.mxu0 0.0
        %447 = vmatpush1.xpose.msra.mxu0 0.0
        %448 = vmatprep.subr.mxu0 0.0
        %449 = vmatpush1.xpose.msra.mxu0 0.0
        %450 = vmatprep.subr.mxu0 0.0
        %451 = vmatpush1.xpose.msra.mxu0 0.0
        %452 = vmatprep.subr.mxu0 0.0
        %453 = vmatpush1.xpose.msra.mxu0 0.0
        %454 = vmatprep.subr.mxu0 0.0
        %455 = vmatpush1.xpose.msra.mxu0 0.0
        %456 = vmatprep.subr.mxu0 0.0
        %457 = vmatpush1.xpose.msra.mxu0 0.0
        %458 = vmatprep.subr.mxu0 0.0
        %459 = vmatpush1.xpose.msra.mxu0 0.0
        %460 = vmatprep.subr.mxu0 0.0
        %461 = vmatpush1.xpose.msra.mxu0 0.0
        %462 = vmatprep.subr.mxu0 0.0
        %463 = vmatpush1.xpose.msra.mxu0 0.0
        %464 = vmatprep.subr.mxu0 0.0
        %465 = vmatpush1.xpose.msra.mxu0 0.0
        %466 = vmatprep.subr.mxu0 0.0
        %467 = vmatpush1.xpose.msra.mxu0 0.0
        %468 = vmatprep.subr.mxu0 0.0
        %469 = vmatpush1.xpose.msra.mxu0 0.0
        %470 = vmatprep.mubr.f32.mxu0 0.0
        %471 = vmatmul.mubr.f32.gmra.mrb[0].mxu0 %v402
        %v472 = vpop.f32.mrb[0].mxu0
        %v473 = vadd.f32 0.0, %v472
        %v474 = vpop.f32.mrb[0].mxu0
        %475 = vdwg.mxu0
        %v476 = vmul.f32 %v473, 0.35355338
        %v477 = vsel %vm401, %v476, -inf
        %478 = vmax.xlane.f32.xlu0 %v477
        %v479 = vpop.xlane.xlu0 %478
        %v480 = vsub.f32 %v476, %v479
        %v481 = vmul.f32 %v480, 1.442695
        %v482 = vpow.pop %v481
        %v483 = vsel %vm401, %v482, 0.0
        %484 = vadd.xlane.f32.xlu0 %v483
        %v485 = vpop.xlane.xlu0 %484
        %v486 = vrcp.pop %v485
        %v487 = vmul.f32 %v482, %v486
        %488 = vst.msk [vmem:[%s306] sm:$0xff] %vm401, %v487
        %489 = vrot.lane.b32.xlu0 %v395, 64
        %v490 = vpop.permute.xlu0 %489
        %v493 = vsel %vm401, %v487, 0
        %495 = vmatprep.subr.mxu0 0.0
        %496 = vmatpush1.msra.mxu0 %v490
        %497 = vmatprep.subr.mxu0 0.0
        %498 = vmatpush1.msra.mxu0 0.0
        %499 = vmatprep.subr.mxu0 0.0
        %500 = vmatpush1.msra.mxu0 0.0
        %501 = vmatprep.subr.mxu0 0.0
        %502 = vmatpush1.msra.mxu0 0.0
        %503 = vmatprep.subr.mxu0 0.0
        %504 = vmatpush1.msra.mxu0 0.0
        %505 = vmatprep.subr.mxu0 0.0
        %506 = vmatpush1.msra.mxu0 0.0
        %507 = vmatprep.subr.mxu0 0.0
        %508 = vmatpush1.msra.mxu0 0.0
        %509 = vmatprep.subr.mxu0 0.0
        %510 = vmatpush1.msra.mxu0 0.0
        %511 = vmatprep.subr.mxu0 0.0
        %512 = vmatpush1.msra.mxu0 0.0
        %513 = vmatprep.subr.mxu0 0.0
        %514 = vmatpush1.msra.mxu0 0.0
        %515 = vmatprep.subr.mxu0 0.0
        %516 = vmatpush1.msra.mxu0 0.0
        %517 = vmatprep.subr.mxu0 0.0
        %518 = vmatpush1.msra.mxu0 0.0
        %519 = vmatprep.subr.mxu0 0.0
        %520 = vmatpush1.msra.mxu0 0.0
        %521 = vmatprep.subr.mxu0 0.0
        %522 = vmatpush1.msra.mxu0 0.0
        %523 = vmatprep.subr.mxu0 0.0
        %524 = vmatpush1.msra.mxu0 0.0
        %525 = vmatprep.subr.mxu0 0.0
        %526 = vmatpush1.msra.mxu0 0.0
        %527 = vmatprep.subr.mxu0 0.0
        %528 = vmatpush1.msra.mxu0 0.0
        %529 = vmatprep.subr.mxu0 0.0
        %530 = vmatpush1.msra.mxu0 0.0
        %531 = vmatprep.subr.mxu0 0.0
        %532 = vmatpush1.msra.mxu0 0.0
        %533 = vmatprep.subr.mxu0 0.0
        %534 = vmatpush1.msra.mxu0 0.0
        %535 = vmatprep.subr.mxu0 0.0
        %536 = vmatpush1.msra.mxu0 0.0
        %537 = vmatprep.subr.mxu0 0.0
        %538 = vmatpush1.msra.mxu0 0.0
        %539 = vmatprep.subr.mxu0 0.0
        %540 = vmatpush1.msra.mxu0 0.0
        %541 = vmatprep.subr.mxu0 0.0
        %542 = vmatpush1.msra.mxu0 0.0
        %543 = vmatprep.subr.mxu0 0.0
        %544 = vmatpush1.msra.mxu0 0.0
        %545 = vmatprep.subr.mxu0 0.0
        %546 = vmatpush1.msra.mxu0 0.0
        %547 = vmatprep.subr.mxu0 0.0
        %548 = vmatpush1.msra.mxu0 0.0
        %549 = vmatprep.subr.mxu0 0.0
        %550 = vmatpush1.msra.mxu0 0.0
        %551 = vmatprep.subr.mxu0 0.0
        %552 = vmatpush1.msra.mxu0 0.0
        %553 = vmatprep.subr.mxu0 0.0
        %554 = vmatpush1.msra.mxu0 0.0
        %555 = vmatprep.subr.mxu0 0.0
        %556 = vmatpush1.msra.mxu0 0.0
        %557 = vmatprep.subr.mxu0 0.0
        %558 = vmatpush1.msra.mxu0 0.0
        %559 = vmatprep.mubr.f32.mxu0 0.0
        %560 = vmatmul.mubr.f32.gmra.mrb[0].mxu0 %v493
        %v561 = vpop.f32.mrb[0].mxu0
        %v562 = vadd.f32 0.0, %v561
        %v563 = vpop.f32.mrb[0].mxu0
        %564 = vdwg.mxu0
        %565 = vrot.lane.b32.xlu0 %v395, 120
        %v566 = vpop.permute.xlu0 %565
        %567 = vrot.lane.b32.xlu0 %v395, 88
        %v568 = vpop.permute.xlu0 %567
        %v569 = vsel %vm401, %v566, 0
        %v571 = vsel %vm401, %v568, 0
        %573 = vmatprep.subr.mxu0 0.0
        %574 = vmatpush1.xpose.msra.mxu0 %v571
        %575 = vmatprep.subr.mxu0 0.0
        %576 = vmatpush1.xpose.msra.mxu0 0.0
        %577 = vmatprep.subr.mxu0 0.0
        %578 = vmatpush1.xpose.msra.mxu0 0.0
        %579 = vmatprep.subr.mxu0 0.0
        %580 = vmatpush1.xpose.msra.mxu0 0.0
        %581 = vmatprep.subr.mxu0 0.0
        %582 = vmatpush1.xpose.msra.mxu0 0.0
        %583 = vmatprep.subr.mxu0 0.0
        %584 = vmatpush1.xpose.msra.mxu0 0.0
        %585 = vmatprep.subr.mxu0 0.0
        %586 = vmatpush1.xpose.msra.mxu0 0.0
        %587 = vmatprep.subr.mxu0 0.0
        %588 = vmatpush1.xpose.msra.mxu0 0.0
        %589 = vmatprep.subr.mxu0 0.0
        %590 = vmatpush1.xpose.msra.mxu0 0.0
        %591 = vmatprep.subr.mxu0 0.0
        %592 = vmatpush1.xpose.msra.mxu0 0.0
        %593 = vmatprep.subr.mxu0 0.0
        %594 = vmatpush1.xpose.msra.mxu0 0.0
        %595 = vmatprep.subr.mxu0 0.0
        %596 = vmatpush1.xpose.msra.mxu0 0.0
        %597 = vmatprep.subr.mxu0 0.0
        %598 = vmatpush1.xpose.msra.mxu0 0.0
        %599 = vmatprep.subr.mxu0 0.0
        %600 = vmatpush1.xpose.msra.mxu0 0.0
        %601 = vmatprep.subr.mxu0 0.0
        %602 = vmatpush1.xpose.msra.mxu0 0.0
        %603 = vmatprep.subr.mxu0 0.0
        %604 = vmatpush1.xpose.msra.mxu0 0.0
        %605 = vmatprep.subr.mxu0 0.0
        %606 = vmatpush1.xpose.msra.mxu0 0.0
        %607 = vmatprep.subr.mxu0 0.0
        %608 = vmatpush1.xpose.msra.mxu0 0.0
        %609 = vmatprep.subr.mxu0 0.0
        %610 = vmatpush1.xpose.msra.mxu0 0.0
        %611 = vmatprep.subr.mxu0 0.0
        %612 = vmatpush1.xpose.msra.mxu0 0.0
        %613 = vmatprep.subr.mxu0 0.0
        %614 = vmatpush1.xpose.msra.mxu0 0.0
        %615 = vmatprep.subr.mxu0 0.0
        %616 = vmatpush1.xpose.msra.mxu0 0.0
        %617 = vmatprep.subr.mxu0 0.0
        %618 = vmatpush1.xpose.msra.mxu0 0.0
        %619 = vmatprep.subr.mxu0 0.0
        %620 = vmatpush1.xpose.msra.mxu0 0.0
        %621 = vmatprep.subr.mxu0 0.0
        %622 = vmatpush1.xpose.msra.mxu0 0.0
        %623 = vmatprep.subr.mxu0 0.0
        %624 = vmatpush1.xpose.msra.mxu0 0.0
        %625 = vmatprep.subr.mxu0 0.0
        %626 = vmatpush1.xpose.msra.mxu0 0.0
        %627 = vmatprep.subr.mxu0 0.0
        %628 = vmatpush1.xpose.msra.mxu0 0.0
        %629 = vmatprep.subr.mxu0 0.0
        %630 = vmatpush1.xpose.msra.mxu0 0.0
        %631 = vmatprep.subr.mxu0 0.0
        %632 = vmatpush1.xpose.msra.mxu0 0.0
        %633 = vmatprep.subr.mxu0 0.0
        %634 = vmatpush1.xpose.msra.mxu0 0.0
        %635 = vmatprep.subr.mxu0 0.0
        %636 = vmatpush1.xpose.msra.mxu0 0.0
        %637 = vmatprep.mubr.f32.mxu0 0.0
        %638 = vmatmul.mubr.f32.gmra.mrb[0].mxu0 %v569
        %v639 = vpop.f32.mrb[0].mxu0
        %v640 = vadd.f32 0.0, %v639
        %v641 = vpop.f32.mrb[0].mxu0
        %642 = vdwg.mxu0
        %v643 = vmul.f32 %v640, 0.35355338
        %v644 = vsel %vm401, %v643, -inf
        %645 = vmax.xlane.f32.xlu0 %v644
        %v646 = vpop.xlane.xlu0 %645
        %v647 = vsub.f32 %v643, %v646
        %v648 = vmul.f32 %v647, 1.442695
        %v649 = vpow.pop %v648
        %v650 = vsel %vm401, %v649, 0.0
        %651 = vadd.xlane.f32.xlu0 %v650
        %v652 = vpop.xlane.xlu0 %651
        %v653 = vrcp.pop %v652
        %v654 = vmul.f32 %v649, %v653
        %s655 = scalar_lea.vmem %s306, 8 [#allocation9]
        %656 = vst.msk [vmem:[%s655] sm:$0xff] %vm401, %v654
        %657 = vrot.lane.b32.xlu0 %v395, 56
        %v658 = vpop.permute.xlu0 %657
        %v661 = vsel %vm401, %v654, 0
        %663 = vmatprep.subr.mxu0 0.0
        %664 = vmatpush1.msra.mxu0 %v658
        %665 = vmatprep.subr.mxu0 0.0
        %666 = vmatpush1.msra.mxu0 0.0
        %667 = vmatprep.subr.mxu0 0.0
        %668 = vmatpush1.msra.mxu0 0.0
        %669 = vmatprep.subr.mxu0 0.0
        %670 = vmatpush1.msra.mxu0 0.0
        %671 = vmatprep.subr.mxu0 0.0
        %672 = vmatpush1.msra.mxu0 0.0
        %673 = vmatprep.subr.mxu0 0.0
        %674 = vmatpush1.msra.mxu0 0.0
        %675 = vmatprep.subr.mxu0 0.0
        %676 = vmatpush1.msra.mxu0 0.0
        %677 = vmatprep.subr.mxu0 0.0
        %678 = vmatpush1.msra.mxu0 0.0
        %679 = vmatprep.subr.mxu0 0.0
        %680 = vmatpush1.msra.mxu0 0.0
        %681 = vmatprep.subr.mxu0 0.0
        %682 = vmatpush1.msra.mxu0 0.0
        %683 = vmatprep.subr.mxu0 0.0
        %684 = vmatpush1.msra.mxu0 0.0
        %685 = vmatprep.subr.mxu0 0.0
        %686 = vmatpush1.msra.mxu0 0.0
        %687 = vmatprep.subr.mxu0 0.0
        %688 = vmatpush1.msra.mxu0 0.0
        %689 = vmatprep.subr.mxu0 0.0
        %690 = vmatpush1.msra.mxu0 0.0
        %691 = vmatprep.subr.mxu0 0.0
        %692 = vmatpush1.msra.mxu0 0.0
        %693 = vmatprep.subr.mxu0 0.0
        %694 = vmatpush1.msra.mxu0 0.0
        %695 = vmatprep.subr.mxu0 0.0
        %696 = vmatpush1.msra.mxu0 0.0
        %697 = vmatprep.subr.mxu0 0.0
        %698 = vmatpush1.msra.mxu0 0.0
        %699 = vmatprep.subr.mxu0 0.0
        %700 = vmatpush1.msra.mxu0 0.0
        %701 = vmatprep.subr.mxu0 0.0
        %702 = vmatpush1.msra.mxu0 0.0
        %703 = vmatprep.subr.mxu0 0.0
        %704 = vmatpush1.msra.mxu0 0.0
        %705 = vmatprep.subr.mxu0 0.0
        %706 = vmatpush1.msra.mxu0 0.0
        %707 = vmatprep.subr.mxu0 0.0
        %708 = vmatpush1.msra.mxu0 0.0
        %709 = vmatprep.subr.mxu0 0.0
        %710 = vmatpush1.msra.mxu0 0.0
        %711 = vmatprep.subr.mxu0 0.0
        %712 = vmatpush1.msra.mxu0 0.0
        %713 = vmatprep.subr.mxu0 0.0
        %714 = vmatpush1.msra.mxu0 0.0
        %715 = vmatprep.subr.mxu0 0.0
        %716 = vmatpush1.msra.mxu0 0.0
        %717 = vmatprep.subr.mxu0 0.0
        %718 = vmatpush1.msra.mxu0 0.0
        %719 = vmatprep.subr.mxu0 0.0
        %720 = vmatpush1.msra.mxu0 0.0
        %721 = vmatprep.subr.mxu0 0.0
        %722 = vmatpush1.msra.mxu0 0.0
        %723 = vmatprep.subr.mxu0 0.0
        %724 = vmatpush1.msra.mxu0 0.0
        %725 = vmatprep.subr.mxu0 0.0
        %726 = vmatpush1.msra.mxu0 0.0
        %727 = vmatprep.mubr.f32.mxu0 0.0
        %728 = vmatmul.mubr.f32.gmra.mrb[0].mxu0 %v661
        %v729 = vpop.f32.mrb[0].mxu0
        %v730 = vadd.f32 0.0, %v729
        %v731 = vpop.f32.mrb[0].mxu0
        %732 = vdwg.mxu0
        %v734 = vsel %vm401, %v730, 0
        %736 = vmatprep.subr.mxu0 0.0
        %737 = vmatpush1.msra.mxu0 %v314
        %738 = vmatprep.subr.mxu0 0.0
        %739 = vmatpush1.msra.mxu0 0.0
        %740 = vmatprep.subr.mxu0 0.0
        %741 = vmatpush1.msra.mxu0 0.0
        %742 = vmatprep.subr.mxu0 0.0
        %743 = vmatpush1.msra.mxu0 0.0
        %744 = vmatprep.subr.mxu0 0.0
        %745 = vmatpush1.msra.mxu0 0.0
        %746 = vmatprep.subr.mxu0 0.0
        %747 = vmatpush1.msra.mxu0 0.0
        %748 = vmatprep.subr.mxu0 0.0
        %749 = vmatpush1.msra.mxu0 0.0
        %750 = vmatprep.subr.mxu0 0.0
        %751 = vmatpush1.msra.mxu0 0.0
        %752 = vmatprep.subr.mxu0 0.0
        %753 = vmatpush1.msra.mxu0 0.0
        %754 = vmatprep.subr.mxu0 0.0
        %755 = vmatpush1.msra.mxu0 0.0
        %756 = vmatprep.subr.mxu0 0.0
        %757 = vmatpush1.msra.mxu0 0.0
        %758 = vmatprep.subr.mxu0 0.0
        %759 = vmatpush1.msra.mxu0 0.0
        %760 = vmatprep.subr.mxu0 0.0
        %761 = vmatpush1.msra.mxu0 0.0
        %762 = vmatprep.subr.mxu0 0.0
        %763 = vmatpush1.msra.mxu0 0.0
        %764 = vmatprep.subr.mxu0 0.0
        %765 = vmatpush1.msra.mxu0 0.0
        %766 = vmatprep.subr.mxu0 0.0
        %767 = vmatpush1.msra.mxu0 0.0
        %768 = vmatprep.subr.mxu0 0.0
        %769 = vmatpush1.msra.mxu0 0.0
        %770 = vmatprep.subr.mxu0 0.0
        %771 = vmatpush1.msra.mxu0 0.0
        %772 = vmatprep.subr.mxu0 0.0
        %773 = vmatpush1.msra.mxu0 0.0
        %774 = vmatprep.subr.mxu0 0.0
        %775 = vmatpush1.msra.mxu0 0.0
        %776 = vmatprep.subr.mxu0 0.0
        %777 = vmatpush1.msra.mxu0 0.0
        %778 = vmatprep.subr.mxu0 0.0
        %779 = vmatpush1.msra.mxu0 0.0
        %780 = vmatprep.subr.mxu0 0.0
        %781 = vmatpush1.msra.mxu0 0.0
        %782 = vmatprep.subr.mxu0 0.0
        %783 = vmatpush1.msra.mxu0 0.0
        %784 = vmatprep.subr.mxu0 0.0
        %785 = vmatpush1.msra.mxu0 0.0
        %786 = vmatprep.subr.mxu0 0.0
        %787 = vmatpush1.msra.mxu0 0.0
        %788 = vmatprep.subr.mxu0 0.0
        %789 = vmatpush1.msra.mxu0 0.0
        %790 = vmatprep.subr.mxu0 0.0
        %791 = vmatpush1.msra.mxu0 0.0
        %792 = vmatprep.subr.mxu0 0.0
        %793 = vmatpush1.msra.mxu0 0.0
        %794 = vmatprep.subr.mxu0 0.0
        %795 = vmatpush1.msra.mxu0 0.0
        %796 = vmatprep.subr.mxu0 0.0
        %797 = vmatpush1.msra.mxu0 0.0
        %798 = vmatprep.subr.mxu0 0.0
        %799 = vmatpush1.msra.mxu0 0.0
        %800 = vmatprep.mubr.f32.mxu0 0.0
        %801 = vmatmul.mubr.f32.gmra.mrb[0].mxu0 %v734
        %v802 = vpop.f32.mrb[0].mxu0
        %v803 = vadd.f32 0.0, %v802
        %v804 = vpop.f32.mrb[0].mxu0
        %805 = vdwg.mxu0
        %v807 = vsel %vm401, %v562, 0
        %809 = vmatprep.subr.mxu0 0.0
        %810 = vmatpush1.msra.mxu0 %v313
        %811 = vmatprep.subr.mxu0 0.0
        %812 = vmatpush1.msra.mxu0 0.0
        %813 = vmatprep.subr.mxu0 0.0
        %814 = vmatpush1.msra.mxu0 0.0
        %815 = vmatprep.subr.mxu0 0.0
        %816 = vmatpush1.msra.mxu0 0.0
        %817 = vmatprep.subr.mxu0 0.0
        %818 = vmatpush1.msra.mxu0 0.0
        %819 = vmatprep.subr.mxu0 0.0
        %820 = vmatpush1.msra.mxu0 0.0
        %821 = vmatprep.subr.mxu0 0.0
        %822 = vmatpush1.msra.mxu0 0.0
        %823 = vmatprep.subr.mxu0 0.0
        %824 = vmatpush1.msra.mxu0 0.0
        %825 = vmatprep.subr.mxu0 0.0
        %826 = vmatpush1.msra.mxu0 0.0
        %827 = vmatprep.subr.mxu0 0.0
        %828 = vmatpush1.msra.mxu0 0.0
        %829 = vmatprep.subr.mxu0 0.0
        %830 = vmatpush1.msra.mxu0 0.0
        %831 = vmatprep.subr.mxu0 0.0
        %832 = vmatpush1.msra.mxu0 0.0
        %833 = vmatprep.subr.mxu0 0.0
        %834 = vmatpush1.msra.mxu0 0.0
        %835 = vmatprep.subr.mxu0 0.0
        %836 = vmatpush1.msra.mxu0 0.0
        %837 = vmatprep.subr.mxu0 0.0
        %838 = vmatpush1.msra.mxu0 0.0
        %839 = vmatprep.subr.mxu0 0.0
        %840 = vmatpush1.msra.mxu0 0.0
        %841 = vmatprep.subr.mxu0 0.0
        %842 = vmatpush1.msra.mxu0 0.0
        %843 = vmatprep.subr.mxu0 0.0
        %844 = vmatpush1.msra.mxu0 0.0
        %845 = vmatprep.subr.mxu0 0.0
        %846 = vmatpush1.msra.mxu0 0.0
        %847 = vmatprep.subr.mxu0 0.0
        %848 = vmatpush1.msra.mxu0 0.0
        %849 = vmatprep.subr.mxu0 0.0
        %850 = vmatpush1.msra.mxu0 0.0
        %851 = vmatprep.subr.mxu0 0.0
        %852 = vmatpush1.msra.mxu0 0.0
        %853 = vmatprep.subr.mxu0 0.0
        %854 = vmatpush1.msra.mxu0 0.0
        %855 = vmatprep.subr.mxu0 0.0
        %856 = vmatpush1.msra.mxu0 0.0
        %857 = vmatprep.subr.mxu0 0.0
        %858 = vmatpush1.msra.mxu0 0.0
        %859 = vmatprep.subr.mxu0 0.0
        %860 = vmatpush1.msra.mxu0 0.0
        %861 = vmatprep.subr.mxu0 0.0
        %862 = vmatpush1.msra.mxu0 0.0
        %863 = vmatprep.subr.mxu0 0.0
        %864 = vmatpush1.msra.mxu0 0.0
        %865 = vmatprep.subr.mxu0 0.0
        %866 = vmatpush1.msra.mxu0 0.0
        %867 = vmatprep.subr.mxu0 0.0
        %868 = vmatpush1.msra.mxu0 0.0
        %869 = vmatprep.subr.mxu0 0.0
        %870 = vmatpush1.msra.mxu0 0.0
        %871 = vmatprep.subr.mxu0 0.0
        %872 = vmatpush1.msra.mxu0 0.0
        %873 = vmatprep.mubr.f32.mxu0 0.0
        %874 = vmatmul.mubr.f32.gmra.mrb[0].mxu0 %v807
        %v875 = vpop.f32.mrb[0].mxu0
        %v876 = vadd.f32 %v803, %v875
        %v877 = vpop.f32.mrb[0].mxu0
        %878 = vdwg.mxu0
        %879 = vrot.lane.b32.xlu0 %v395, 112
        %v880 = vpop.permute.xlu0 %879
        %881 = vrot.lane.b32.xlu0 %v395, 80
        %v882 = vpop.permute.xlu0 %881
        %v883 = vsel %vm401, %v880, 0
        %v885 = vsel %vm401, %v882, 0
        %887 = vmatprep.subr.mxu0 0.0
        %888 = vmatpush1.xpose.msra.mxu0 %v885
        %889 = vmatprep.subr.mxu0 0.0
        %890 = vmatpush1.xpose.msra.mxu0 0.0
        %891 = vmatprep.subr.mxu0 0.0
        %892 = vmatpush1.xpose.msra.mxu0 0.0
        %893 = vmatprep.subr.mxu0 0.0
        %894 = vmatpush1.xpose.msra.mxu0 0.0
        %895 = vmatprep.subr.mxu0 0.0
        %896 = vmatpush1.xpose.msra.mxu0 0.0
        %897 = vmatprep.subr.mxu0 0.0
        %898 = vmatpush1.xpose.msra.mxu0 0.0
        %899 = vmatprep.subr.mxu0 0.0
        %900 = vmatpush1.xpose.msra.mxu0 0.0
        %901 = vmatprep.subr.mxu0 0.0
        %902 = vmatpush1.xpose.msra.mxu0 0.0
        %903 = vmatprep.subr.mxu0 0.0
        %904 = vmatpush1.xpose.msra.mxu0 0.0
        %905 = vmatprep.subr.mxu0 0.0
        %906 = vmatpush1.xpose.msra.mxu0 0.0
        %907 = vmatprep.subr.mxu0 0.0
        %908 = vmatpush1.xpose.msra.mxu0 0.0
        %909 = vmatprep.subr.mxu0 0.0
        %910 = vmatpush1.xpose.msra.mxu0 0.0
        %911 = vmatprep.subr.mxu0 0.0
        %912 = vmatpush1.xpose.msra.mxu0 0.0
        %913 = vmatprep.subr.mxu0 0.0
        %914 = vmatpush1.xpose.msra.mxu0 0.0
        %915 = vmatprep.subr.mxu0 0.0
        %916 = vmatpush1.xpose.msra.mxu0 0.0
        %917 = vmatprep.subr.mxu0 0.0
        %918 = vmatpush1.xpose.msra.mxu0 0.0
        %919 = vmatprep.subr.mxu0 0.0
        %920 = vmatpush1.xpose.msra.mxu0 0.0
        %921 = vmatprep.subr.mxu0 0.0
        %922 = vmatpush1.xpose.msra.mxu0 0.0
        %923 = vmatprep.subr.mxu0 0.0
        %924 = vmatpush1.xpose.msra.mxu0 0.0
        %925 = vmatprep.subr.mxu0 0.0
        %926 = vmatpush1.xpose.msra.mxu0 0.0
        %927 = vmatprep.subr.mxu0 0.0
        %928 = vmatpush1.xpose.msra.mxu0 0.0
        %929 = vmatprep.subr.mxu0 0.0
        %930 = vmatpush1.xpose.msra.mxu0 0.0
        %931 = vmatprep.subr.mxu0 0.0
        %932 = vmatpush1.xpose.msra.mxu0 0.0
        %933 = vmatprep.subr.mxu0 0.0
        %934 = vmatpush1.xpose.msra.mxu0 0.0
        %935 = vmatprep.subr.mxu0 0.0
        %936 = vmatpush1.xpose.msra.mxu0 0.0
        %937 = vmatprep.subr.mxu0 0.0
        %938 = vmatpush1.xpose.msra.mxu0 0.0
        %939 = vmatprep.subr.mxu0 0.0
        %940 = vmatpush1.xpose.msra.mxu0 0.0
        %941 = vmatprep.subr.mxu0 0.0
        %942 = vmatpush1.xpose.msra.mxu0 0.0
        %943 = vmatprep.subr.mxu0 0.0
        %944 = vmatpush1.xpose.msra.mxu0 0.0
        %945 = vmatprep.subr.mxu0 0.0
        %946 = vmatpush1.xpose.msra.mxu0 0.0
        %947 = vmatprep.subr.mxu0 0.0
        %948 = vmatpush1.xpose.msra.mxu0 0.0
        %949 = vmatprep.subr.mxu0 0.0
        %950 = vmatpush1.xpose.msra.mxu0 0.0
        %951 = vmatprep.mubr.f32.mxu0 0.0
        %952 = vmatmul.mubr.f32.gmra.mrb[0].mxu0 %v883
        %v953 = vpop.f32.mrb[0].mxu0
        %v954 = vadd.f32 0.0, %v953
        %v955 = vpop.f32.mrb[0].mxu0
        %956 = vdwg.mxu0
        %v957 = vmul.f32 %v954, 0.35355338
        %v958 = vsel %vm401, %v957, -inf
        %959 = vmax.xlane.f32.xlu0 %v958
        %v960 = vpop.xlane.xlu0 %959
        %v961 = vsub.f32 %v957, %v960
        %v962 = vmul.f32 %v961, 1.442695
        %v963 = vpow.pop %v962
        %v964 = vsel %vm401, %v963, 0.0
        %965 = vadd.xlane.f32.xlu0 %v964
        %v966 = vpop.xlane.xlu0 %965
        %v967 = vrcp.pop %v966
        %v968 = vmul.f32 %v963, %v967
        %s969 = scalar_lea.vmem %s306, 16 [#allocation9]
        %970 = vst.msk [vmem:[%s969] sm:$0xff] %vm401, %v968
        %971 = vrot.lane.b32.xlu0 %v395, 48
        %v972 = vpop.permute.xlu0 %971
        %v975 = vsel %vm401, %v968, 0
        %977 = vmatprep.subr.mxu0 0.0
        %978 = vmatpush1.msra.mxu0 %v972
        %979 = vmatprep.subr.mxu0 0.0
        %980 = vmatpush1.msra.mxu0 0.0
        %981 = vmatprep.subr.mxu0 0.0
        %982 = vmatpush1.msra.mxu0 0.0
        %983 = vmatprep.subr.mxu0 0.0
        %984 = vmatpush1.msra.mxu0 0.0
        %985 = vmatprep.subr.mxu0 0.0
        %986 = vmatpush1.msra.mxu0 0.0
        %987 = vmatprep.subr.mxu0 0.0
        %988 = vmatpush1.msra.mxu0 0.0
        %989 = vmatprep.subr.mxu0 0.0
        %990 = vmatpush1.msra.mxu0 0.0
        %991 = vmatprep.subr.mxu0 0.0
        %992 = vmatpush1.msra.mxu0 0.0
        %993 = vmatprep.subr.mxu0 0.0
        %994 = vmatpush1.msra.mxu0 0.0
        %995 = vmatprep.subr.mxu0 0.0
        %996 = vmatpush1.msra.mxu0 0.0
        %997 = vmatprep.subr.mxu0 0.0
        %998 = vmatpush1.msra.mxu0 0.0
        %999 = vmatprep.subr.mxu0 0.0
        %1000 = vmatpush1.msra.mxu0 0.0
        %1001 = vmatprep.subr.mxu0 0.0
        %1002 = vmatpush1.msra.mxu0 0.0
        %1003 = vmatprep.subr.mxu0 0.0
        %1004 = vmatpush1.msra.mxu0 0.0
        %1005 = vmatprep.subr.mxu0 0.0
        %1006 = vmatpush1.msra.mxu0 0.0
        %1007 = vmatprep.subr.mxu0 0.0
        %1008 = vmatpush1.msra.mxu0 0.0
        %1009 = vmatprep.subr.mxu0 0.0
        %1010 = vmatpush1.msra.mxu0 0.0
        %1011 = vmatprep.subr.mxu0 0.0
        %1012 = vmatpush1.msra.mxu0 0.0
        %1013 = vmatprep.subr.mxu0 0.0
        %1014 = vmatpush1.msra.mxu0 0.0
        %1015 = vmatprep.subr.mxu0 0.0
        %1016 = vmatpush1.msra.mxu0 0.0
        %1017 = vmatprep.subr.mxu0 0.0
        %1018 = vmatpush1.msra.mxu0 0.0
        %1019 = vmatprep.subr.mxu0 0.0
        %1020 = vmatpush1.msra.mxu0 0.0
        %1021 = vmatprep.subr.mxu0 0.0
        %1022 = vmatpush1.msra.mxu0 0.0
        %1023 = vmatprep.subr.mxu0 0.0
        %1024 = vmatpush1.msra.mxu0 0.0
        %1025 = vmatprep.subr.mxu0 0.0
        %1026 = vmatpush1.msra.mxu0 0.0
        %1027 = vmatprep.subr.mxu0 0.0
        %1028 = vmatpush1.msra.mxu0 0.0
        %1029 = vmatprep.subr.mxu0 0.0
        %1030 = vmatpush1.msra.mxu0 0.0
        %1031 = vmatprep.subr.mxu0 0.0
        %1032 = vmatpush1.msra.mxu0 0.0
        %1033 = vmatprep.subr.mxu0 0.0
        %1034 = vmatpush1.msra.mxu0 0.0
        %1035 = vmatprep.subr.mxu0 0.0
        %1036 = vmatpush1.msra.mxu0 0.0
        %1037 = vmatprep.subr.mxu0 0.0
        %1038 = vmatpush1.msra.mxu0 0.0
        %1039 = vmatprep.subr.mxu0 0.0
        %1040 = vmatpush1.msra.mxu0 0.0
        %1041 = vmatprep.mubr.f32.mxu0 0.0
        %1042 = vmatmul.mubr.f32.gmra.mrb[0].mxu0 %v975
        %v1043 = vpop.f32.mrb[0].mxu0
        %v1044 = vadd.f32 0.0, %v1043
        %v1045 = vpop.f32.mrb[0].mxu0
        %1046 = vdwg.mxu0
        %v1048 = vsel %vm401, %v1044, 0
        %1050 = vmatprep.subr.mxu0 0.0
        %1051 = vmatpush1.msra.mxu0 %v315
        %1052 = vmatprep.subr.mxu0 0.0
        %1053 = vmatpush1.msra.mxu0 0.0
        %1054 = vmatprep.subr.mxu0 0.0
        %1055 = vmatpush1.msra.mxu0 0.0
        %1056 = vmatprep.subr.mxu0 0.0
        %1057 = vmatpush1.msra.mxu0 0.0
        %1058 = vmatprep.subr.mxu0 0.0
        %1059 = vmatpush1.msra.mxu0 0.0
        %1060 = vmatprep.subr.mxu0 0.0
        %1061 = vmatpush1.msra.mxu0 0.0
        %1062 = vmatprep.subr.mxu0 0.0
        %1063 = vmatpush1.msra.mxu0 0.0
        %1064 = vmatprep.subr.mxu0 0.0
        %1065 = vmatpush1.msra.mxu0 0.0
        %1066 = vmatprep.subr.mxu0 0.0
        %1067 = vmatpush1.msra.mxu0 0.0
        %1068 = vmatprep.subr.mxu0 0.0
        %1069 = vmatpush1.msra.mxu0 0.0
        %1070 = vmatprep.subr.mxu0 0.0
        %1071 = vmatpush1.msra.mxu0 0.0
        %1072 = vmatprep.subr.mxu0 0.0
        %1073 = vmatpush1.msra.mxu0 0.0
        %1074 = vmatprep.subr.mxu0 0.0
        %1075 = vmatpush1.msra.mxu0 0.0
        %1076 = vmatprep.subr.mxu0 0.0
        %1077 = vmatpush1.msra.mxu0 0.0
        %1078 = vmatprep.subr.mxu0 0.0
        %1079 = vmatpush1.msra.mxu0 0.0
        %1080 = vmatprep.subr.mxu0 0.0
        %1081 = vmatpush1.msra.mxu0 0.0
        %1082 = vmatprep.subr.mxu0 0.0
        %1083 = vmatpush1.msra.mxu0 0.0
        %1084 = vmatprep.subr.mxu0 0.0
        %1085 = vmatpush1.msra.mxu0 0.0
        %1086 = vmatprep.subr.mxu0 0.0
        %1087 = vmatpush1.msra.mxu0 0.0
        %1088 = vmatprep.subr.mxu0 0.0
        %1089 = vmatpush1.msra.mxu0 0.0
        %1090 = vmatprep.subr.mxu0 0.0
        %1091 = vmatpush1.msra.mxu0 0.0
        %1092 = vmatprep.subr.mxu0 0.0
        %1093 = vmatpush1.msra.mxu0 0.0
        %1094 = vmatprep.subr.mxu0 0.0
        %1095 = vmatpush1.msra.mxu0 0.0
        %1096 = vmatprep.subr.mxu0 0.0
        %1097 = vmatpush1.msra.mxu0 0.0
        %1098 = vmatprep.subr.mxu0 0.0
        %1099 = vmatpush1.msra.mxu0 0.0
        %1100 = vmatprep.subr.mxu0 0.0
        %1101 = vmatpush1.msra.mxu0 0.0
        %1102 = vmatprep.subr.mxu0 0.0
        %1103 = vmatpush1.msra.mxu0 0.0
        %1104 = vmatprep.subr.mxu0 0.0
        %1105 = vmatpush1.msra.mxu0 0.0
        %1106 = vmatprep.subr.mxu0 0.0
        %1107 = vmatpush1.msra.mxu0 0.0
        %1108 = vmatprep.subr.mxu0 0.0
        %1109 = vmatpush1.msra.mxu0 0.0
        %1110 = vmatprep.subr.mxu0 0.0
        %1111 = vmatpush1.msra.mxu0 0.0
        %1112 = vmatprep.subr.mxu0 0.0
        %1113 = vmatpush1.msra.mxu0 0.0
        %1114 = vmatprep.mubr.f32.mxu0 0.0
        %1115 = vmatmul.mubr.f32.gmra.mrb[0].mxu0 %v1048
        %v1116 = vpop.f32.mrb[0].mxu0
        %v1117 = vadd.f32 0.0, %v1116
        %v1118 = vpop.f32.mrb[0].mxu0
        %1119 = vdwg.mxu0
        %v1120 = vadd.f32 %v876, %v1117
        %1121 = vrot.lane.b32.xlu0 %v395, 104
        %v1122 = vpop.permute.xlu0 %1121
        %1123 = vrot.lane.b32.xlu0 %v395, 72
        %v1124 = vpop.permute.xlu0 %1123
        %v1125 = vsel %vm401, %v1122, 0
        %v1127 = vsel %vm401, %v1124, 0
        %1129 = vmatprep.subr.mxu0 0.0
        %1130 = vmatpush1.xpose.msra.mxu0 %v1127
        %1131 = vmatprep.subr.mxu0 0.0
        %1132 = vmatpush1.xpose.msra.mxu0 0.0
        %1133 = vmatprep.subr.mxu0 0.0
        %1134 = vmatpush1.xpose.msra.mxu0 0.0
        %1135 = vmatprep.subr.mxu0 0.0
        %1136 = vmatpush1.xpose.msra.mxu0 0.0
        %1137 = vmatprep.subr.mxu0 0.0
        %1138 = vmatpush1.xpose.msra.mxu0 0.0
        %1139 = vmatprep.subr.mxu0 0.0
        %1140 = vmatpush1.xpose.msra.mxu0 0.0
        %1141 = vmatprep.subr.mxu0 0.0
        %1142 = vmatpush1.xpose.msra.mxu0 0.0
        %1143 = vmatprep.subr.mxu0 0.0
        %1144 = vmatpush1.xpose.msra.mxu0 0.0
        %1145 = vmatprep.subr.mxu0 0.0
        %1146 = vmatpush1.xpose.msra.mxu0 0.0
        %1147 = vmatprep.subr.mxu0 0.0
        %1148 = vmatpush1.xpose.msra.mxu0 0.0
        %1149 = vmatprep.subr.mxu0 0.0
        %1150 = vmatpush1.xpose.msra.mxu0 0.0
        %1151 = vmatprep.subr.mxu0 0.0
        %1152 = vmatpush1.xpose.msra.mxu0 0.0
        %1153 = vmatprep.subr.mxu0 0.0
        %1154 = vmatpush1.xpose.msra.mxu0 0.0
        %1155 = vmatprep.subr.mxu0 0.0
        %1156 = vmatpush1.xpose.msra.mxu0 0.0
        %1157 = vmatprep.subr.mxu0 0.0
        %1158 = vmatpush1.xpose.msra.mxu0 0.0
        %1159 = vmatprep.subr.mxu0 0.0
        %1160 = vmatpush1.xpose.msra.mxu0 0.0
        %1161 = vmatprep.subr.mxu0 0.0
        %1162 = vmatpush1.xpose.msra.mxu0 0.0
        %1163 = vmatprep.subr.mxu0 0.0
        %1164 = vmatpush1.xpose.msra.mxu0 0.0
        %1165 = vmatprep.subr.mxu0 0.0
        %1166 = vmatpush1.xpose.msra.mxu0 0.0
        %1167 = vmatprep.subr.mxu0 0.0
        %1168 = vmatpush1.xpose.msra.mxu0 0.0
        %1169 = vmatprep.subr.mxu0 0.0
        %1170 = vmatpush1.xpose.msra.mxu0 0.0
        %1171 = vmatprep.subr.mxu0 0.0
        %1172 = vmatpush1.xpose.msra.mxu0 0.0
        %1173 = vmatprep.subr.mxu0 0.0
        %1174 = vmatpush1.xpose.msra.mxu0 0.0
        %1175 = vmatprep.subr.mxu0 0.0
        %1176 = vmatpush1.xpose.msra.mxu0 0.0
        %1177 = vmatprep.subr.mxu0 0.0
        %1178 = vmatpush1.xpose.msra.mxu0 0.0
        %1179 = vmatprep.subr.mxu0 0.0
        %1180 = vmatpush1.xpose.msra.mxu0 0.0
        %1181 = vmatprep.subr.mxu0 0.0
        %1182 = vmatpush1.xpose.msra.mxu0 0.0
        %1183 = vmatprep.subr.mxu0 0.0
        %1184 = vmatpush1.xpose.msra.mxu0 0.0
        %1185 = vmatprep.subr.mxu0 0.0
        %1186 = vmatpush1.xpose.msra.mxu0 0.0
        %1187 = vmatprep.subr.mxu0 0.0
        %1188 = vmatpush1.xpose.msra.mxu0 0.0
        %1189 = vmatprep.subr.mxu0 0.0
        %1190 = vmatpush1.xpose.msra.mxu0 0.0
        %1191 = vmatprep.subr.mxu0 0.0
        %1192 = vmatpush1.xpose.msra.mxu0 0.0
        %1193 = vmatprep.mubr.f32.mxu0 0.0
        %1194 = vmatmul.mubr.f32.gmra.mrb[0].mxu0 %v1125
        %v1195 = vpop.f32.mrb[0].mxu0
        %v1196 = vadd.f32 0.0, %v1195
        %v1197 = vpop.f32.mrb[0].mxu0
        %1198 = vdwg.mxu0
        %v1199 = vmul.f32 %v1196, 0.35355338
        %v1200 = vsel %vm401, %v1199, -inf
        %1201 = vmax.xlane.f32.xlu0 %v1200
        %v1202 = vpop.xlane.xlu0 %1201
        %v1203 = vsub.f32 %v1199, %v1202
        %v1204 = vmul.f32 %v1203, 1.442695
        %v1205 = vpow.pop %v1204
        %v1206 = vsel %vm401, %v1205, 0.0
        %1207 = vadd.xlane.f32.xlu0 %v1206
        %v1208 = vpop.xlane.xlu0 %1207
        %v1209 = vrcp.pop %v1208
        %v1210 = vmul.f32 %v1205, %v1209
        %s1211 = scalar_lea.vmem %s306, 24 [#allocation9]
        %1212 = vst.msk [vmem:[%s1211] sm:$0xff] %vm401, %v1210
        %1213 = vrot.lane.b32.xlu0 %v395, 40
        %v1214 = vpop.permute.xlu0 %1213
        %v1217 = vsel %vm401, %v1210, 0
        %1219 = vmatprep.subr.mxu0 0.0
        %1220 = vmatpush1.msra.mxu0 %v1214
        %1221 = vmatprep.subr.mxu0 0.0
        %1222 = vmatpush1.msra.mxu0 0.0
        %1223 = vmatprep.subr.mxu0 0.0
        %1224 = vmatpush1.msra.mxu0 0.0
        %1225 = vmatprep.subr.mxu0 0.0
        %1226 = vmatpush1.msra.mxu0 0.0
        %1227 = vmatprep.subr.mxu0 0.0
        %1228 = vmatpush1.msra.mxu0 0.0
        %1229 = vmatprep.subr.mxu0 0.0
        %1230 = vmatpush1.msra.mxu0 0.0
        %1231 = vmatprep.subr.mxu0 0.0
        %1232 = vmatpush1.msra.mxu0 0.0
        %1233 = vmatprep.subr.mxu0 0.0
        %1234 = vmatpush1.msra.mxu0 0.0
        %1235 = vmatprep.subr.mxu0 0.0
        %1236 = vmatpush1.msra.mxu0 0.0
        %1237 = vmatprep.subr.mxu0 0.0
        %1238 = vmatpush1.msra.mxu0 0.0
        %1239 = vmatprep.subr.mxu0 0.0
        %1240 = vmatpush1.msra.mxu0 0.0
        %1241 = vmatprep.subr.mxu0 0.0
        %1242 = vmatpush1.msra.mxu0 0.0
        %1243 = vmatprep.subr.mxu0 0.0
        %1244 = vmatpush1.msra.mxu0 0.0
        %1245 = vmatprep.subr.mxu0 0.0
        %1246 = vmatpush1.msra.mxu0 0.0
        %1247 = vmatprep.subr.mxu0 0.0
        %1248 = vmatpush1.msra.mxu0 0.0
        %1249 = vmatprep.subr.mxu0 0.0
        %1250 = vmatpush1.msra.mxu0 0.0
        %1251 = vmatprep.subr.mxu0 0.0
        %1252 = vmatpush1.msra.mxu0 0.0
        %1253 = vmatprep.subr.mxu0 0.0
        %1254 = vmatpush1.msra.mxu0 0.0
        %1255 = vmatprep.subr.mxu0 0.0
        %1256 = vmatpush1.msra.mxu0 0.0
        %1257 = vmatprep.subr.mxu0 0.0
        %1258 = vmatpush1.msra.mxu0 0.0
        %1259 = vmatprep.subr.mxu0 0.0
        %1260 = vmatpush1.msra.mxu0 0.0
        %1261 = vmatprep.subr.mxu0 0.0
        %1262 = vmatpush1.msra.mxu0 0.0
        %1263 = vmatprep.subr.mxu0 0.0
        %1264 = vmatpush1.msra.mxu0 0.0
        %1265 = vmatprep.subr.mxu0 0.0
        %1266 = vmatpush1.msra.mxu0 0.0
        %1267 = vmatprep.subr.mxu0 0.0
        %1268 = vmatpush1.msra.mxu0 0.0
        %1269 = vmatprep.subr.mxu0 0.0
        %1270 = vmatpush1.msra.mxu0 0.0
        %1271 = vmatprep.subr.mxu0 0.0
        %1272 = vmatpush1.msra.mxu0 0.0
        %1273 = vmatprep.subr.mxu0 0.0
        %1274 = vmatpush1.msra.mxu0 0.0
        %1275 = vmatprep.subr.mxu0 0.0
        %1276 = vmatpush1.msra.mxu0 0.0
        %1277 = vmatprep.subr.mxu0 0.0
        %1278 = vmatpush1.msra.mxu0 0.0
        %1279 = vmatprep.subr.mxu0 0.0
        %1280 = vmatpush1.msra.mxu0 0.0
        %1281 = vmatprep.subr.mxu0 0.0
        %1282 = vmatpush1.msra.mxu0 0.0
        %1283 = vmatprep.mubr.f32.mxu0 0.0
        %1284 = vmatmul.mubr.f32.gmra.mrb[0].mxu0 %v1217
        %v1285 = vpop.f32.mrb[0].mxu0
        %v1286 = vadd.f32 0.0, %v1285
        %v1287 = vpop.f32.mrb[0].mxu0
        %1288 = vdwg.mxu0
        %v1290 = vsel %vm401, %v1286, 0
        %1292 = vmatprep.subr.mxu0 0.0
        %1293 = vmatpush1.msra.mxu0 %v316
        %1294 = vmatprep.subr.mxu0 0.0
        %1295 = vmatpush1.msra.mxu0 0.0
        %1296 = vmatprep.subr.mxu0 0.0
        %1297 = vmatpush1.msra.mxu0 0.0
        %1298 = vmatprep.subr.mxu0 0.0
        %1299 = vmatpush1.msra.mxu0 0.0
        %1300 = vmatprep.subr.mxu0 0.0
        %1301 = vmatpush1.msra.mxu0 0.0
        %1302 = vmatprep.subr.mxu0 0.0
        %1303 = vmatpush1.msra.mxu0 0.0
        %1304 = vmatprep.subr.mxu0 0.0
        %1305 = vmatpush1.msra.mxu0 0.0
        %1306 = vmatprep.subr.mxu0 0.0
        %1307 = vmatpush1.msra.mxu0 0.0
        %1308 = vmatprep.subr.mxu0 0.0
        %1309 = vmatpush1.msra.mxu0 0.0
        %1310 = vmatprep.subr.mxu0 0.0
        %1311 = vmatpush1.msra.mxu0 0.0
        %1312 = vmatprep.subr.mxu0 0.0
        %1313 = vmatpush1.msra.mxu0 0.0
        %1314 = vmatprep.subr.mxu0 0.0
        %1315 = vmatpush1.msra.mxu0 0.0
        %1316 = vmatprep.subr.mxu0 0.0
        %1317 = vmatpush1.msra.mxu0 0.0
        %1318 = vmatprep.subr.mxu0 0.0
        %1319 = vmatpush1.msra.mxu0 0.0
        %1320 = vmatprep.subr.mxu0 0.0
        %1321 = vmatpush1.msra.mxu0 0.0
        %1322 = vmatprep.subr.mxu0 0.0
        %1323 = vmatpush1.msra.mxu0 0.0
        %1324 = vmatprep.subr.mxu0 0.0
        %1325 = vmatpush1.msra.mxu0 0.0
        %1326 = vmatprep.subr.mxu0 0.0
        %1327 = vmatpush1.msra.mxu0 0.0
        %1328 = vmatprep.subr.mxu0 0.0
        %1329 = vmatpush1.msra.mxu0 0.0
        %1330 = vmatprep.subr.mxu0 0.0
        %1331 = vmatpush1.msra.mxu0 0.0
        %1332 = vmatprep.subr.mxu0 0.0
        %1333 = vmatpush1.msra.mxu0 0.0
        %1334 = vmatprep.subr.mxu0 0.0
        %1335 = vmatpush1.msra.mxu0 0.0
        %1336 = vmatprep.subr.mxu0 0.0
        %1337 = vmatpush1.msra.mxu0 0.0
        %1338 = vmatprep.subr.mxu0 0.0
        %1339 = vmatpush1.msra.mxu0 0.0
        %1340 = vmatprep.subr.mxu0 0.0
        %1341 = vmatpush1.msra.mxu0 0.0
        %1342 = vmatprep.subr.mxu0 0.0
        %1343 = vmatpush1.msra.mxu0 0.0
        %1344 = vmatprep.subr.mxu0 0.0
        %1345 = vmatpush1.msra.mxu0 0.0
        %1346 = vmatprep.subr.mxu0 0.0
        %1347 = vmatpush1.msra.mxu0 0.0
        %1348 = vmatprep.subr.mxu0 0.0
        %1349 = vmatpush1.msra.mxu0 0.0
        %1350 = vmatprep.subr.mxu0 0.0
        %1351 = vmatpush1.msra.mxu0 0.0
        %1352 = vmatprep.subr.mxu0 0.0
        %1353 = vmatpush1.msra.mxu0 0.0
        %1354 = vmatprep.subr.mxu0 0.0
        %1355 = vmatpush1.msra.mxu0 0.0
        %1356 = vmatprep.mubr.f32.mxu0 0.0
        %1357 = vmatmul.mubr.f32.gmra.mrb[0].mxu0 %v1290
        %v1358 = vpop.f32.mrb[0].mxu0
        %v1359 = vadd.f32 0.0, %v1358
        %v1360 = vpop.f32.mrb[0].mxu0
        %1361 = vdwg.mxu0
        %v1362 = vadd.f32 %v1120, %v1359
        %v1364 = vlaneseq
        %v1365 = vshrl.u32 %v1364, 7
        %v1366 = vsub.s32 0, %v1365
        %v1367 = vrot.slane %v317, %v1366
        %v1369 = vadd.f32 %v1362, %v1367
        %1370 = vst.msk [vmem:[%s299] sm:$0xff] %vm324, %v1369
        %s1371 = sand.u32 %s146, 1
        %s1372 = scalar_lea.sflag [#allocation4], %s1371
        %s1373 = sand.u32 %s146, 1
        %s1374 = smul.addr %s1373, 8
        %s1375 = scalar_lea.vmem [#allocation8], %s1374
        %s1376 = sand.u32 %s172, 1
        %s1377 = scalar_lea.sflag [#allocation10], %s1376
        %s1378 = sand.u32 %s172, 1
        %s1379 = smul.addr %s1378, 32
        %s1380 = scalar_lea.vmem [#allocation9], %s1379
        // Predicated region
        $region53: #{tpu_custom_call.1} parent=39 // pred_check
          %p1381 = pneg %p156
        $region54: #{tpu_custom_call.1} parent=39 // pred_check_branch
          %1383 = sbr.rel (%p1381) target = $region56
        $region55: #{tpu_custom_call.1} parent=39 // pred_region
          %s1385 = ssub.s32 128, 128
          %1386 = vsyncadd %s1372, %s1385
          %s1387 = smul.addr %s28, 128
          %s1388 = scalar_lea.hbm %s5, %s1387
          %s1390 = sshll.u32 %s1375, 4
          %s1391 = int_to_ptr.vmem [resolvable:$true] %s1390
          %1393 = dma.vmem_to_hbm [thread:$0]  %s1391, 128, %s1388, %s1372
        $region56: #{tpu_custom_call.1} parent=39 // pred_fallthru
          _
        // Predicated region
        $region57: #{tpu_custom_call.1} parent=39 // pred_check
          %p1394 = pneg %p182
        $region58: #{tpu_custom_call.1} parent=39 // pred_check_branch
          %1396 = sbr.rel (%p1394) target = $region60
        $region59: #{tpu_custom_call.1} parent=39 // pred_region
          %s1398 = ssub.s32 512, 512
          %1399 = vsyncadd %s1377, %s1398
          %s1400 = smul.addr %s28, 4
          %s1401 = smul.addr %s1400, 128
          %s1402 = scalar_lea.hbm %s6, %s1401
          %s1403 = sshll.u32 %s1380, 4
          %s1404 = int_to_ptr.vmem [resolvable:$true] %s1403
          %1409 = dma.vmem_to_hbm [thread:$0]  %s1404, 512, %s1402, %s1377, 128, 128, 8
        $region60: #{tpu_custom_call.1} parent=39 // pred_fallthru
          _
      $region40: #{tpu_custom_call.1} parent=5 // pred_fallthru
        _
      %p1410 = scmp.le.s32.totalorder 2, %s23
      // Predicated region
      $region61: #{tpu_custom_call.1} parent=5 // pred_check
        %p1411 = pneg %p1410
      $region62: #{tpu_custom_call.1} parent=5 // pred_check_branch
        %1413 = sbr.rel (%p1411) target = $region64
      $region63: #{tpu_custom_call.1} parent=5 // pred_region
        %s1414 = ssub.s32 %s23, 2
        // Predicated region
        $region65: #{tpu_custom_call.1} parent=63 // pred_check
          %p1415 = pneg %p162
        $region66: #{tpu_custom_call.1} parent=63 // pred_check_branch
          %1417 = sbr.rel (%p1415) target = $region68
        $region67: #{tpu_custom_call.1} parent=63 // pred_region
          %s1418 = sand.u32 %s147, 1
          %s1419 = scalar_lea.sflag [#allocation4], %s1418
          %s1420 = sand.u32 %s147, 1
          %s1421 = smul.addr %s1420, 8
          %s1422 = scalar_lea.vmem [#allocation8], %s1421
          %1423 = dma.done %s1419, 128
        $region68: #{tpu_custom_call.1} parent=63 // pred_fallthru
          _
        // Predicated region
        $region69: #{tpu_custom_call.1} parent=63 // pred_check
          %p1424 = pneg %p188
        $region70: #{tpu_custom_call.1} parent=63 // pred_check_branch
          %1426 = sbr.rel (%p1424) target = $region72
        $region71: #{tpu_custom_call.1} parent=63 // pred_region
          %s1427 = sand.u32 %s173, 1
          %s1428 = scalar_lea.sflag [#allocation10], %s1427
          %s1429 = sand.u32 %s173, 1
          %s1430 = smul.addr %s1429, 32
          %s1431 = scalar_lea.vmem [#allocation9], %s1430
          %1432 = dma.done %s1428, 512
        $region72: #{tpu_custom_call.1} parent=63 // pred_fallthru
          _
      $region64: #{tpu_custom_call.1} parent=5 // pred_fallthru
        _
    $region6: #{tpu_custom_call.1} parent=1 // loop_footer
      %s27 = sadd.s32 1, %s23
    $region7: #{tpu_custom_call.1} parent=1 // loop_footer_branch
      %22 = sbr.rel target = $region3
    $region8: #{tpu_custom_call.1} parent=1 // loop_exit
      _
    %1433 = vsyncpa [#allocation3], 1
    %s1434 = scalar_lea.sflag [#allocation3], 1
    %1435 = vsyncpa %s1434, 1
    %1436 = vsyncpa [#allocation6], 1
    %1437 = vsyncpa [#allocation4], 1
    %s1438 = scalar_lea.sflag [#allocation4], 1
    %1439 = vsyncpa %s1438, 1
    %1440 = vsyncpa [#allocation10], 1
    %s1441 = scalar_lea.sflag [#allocation10], 1
    %1442 = vsyncpa %s1441, 1

</llo_original>
